<compile_context>
chip_gen: v6e
topology: v6e:2x2x1
jax: 0.10.0
libtpu: 0.0.40
codegen_flags: <defaults>
</compile_context>

<pallas_src>
import functools

import jax
import jax.numpy as jnp
from jax import lax
from jax.experimental import pallas as pl
from jax.experimental.pallas import tpu as pltpu

LN_EPS = 1e-5      # torch.nn.LayerNorm default eps
ATTN_EPS = 1e-6    # LoFTR LinearAttention eps


def _fmap(x):
    # elu(x) + 1  (elu alpha=1)
    return jnp.where(x > 0, x + 1.0, jnp.exp(x))


def _layernorm(x, g, b):
    mu = jnp.mean(x, axis=-1, keepdims=True)
    var = jnp.mean((x - mu) ** 2, axis=-1, keepdims=True)
    return (x - mu) * lax.rsqrt(var + LN_EPS) * g + b


def _recip(x, approx):
    if approx:
        return pl.reciprocal(x, approx=True)   # EUP slot, free-ish
    return 1.0 / x


def loftr_kernel(agents_ref, feat_ref, blk_ref,
                 wq_ref, wk_ref, wv_ref, wm_ref,
                 w1a_ref, w1b_ref, w2_ref,
                 g1_ref, b1_ref, g2_ref, b2_ref,
                 feat_out_ref,
                 kv_acc, ksum_acc, kv2_sc, ksum2_sc,
                 *, compute_dtype, approx_recip):
    cdt = compute_dtype
    p = pl.program_id(1)          # phase: 0 = K/V accumulation, 1 = output
    t = pl.program_id(2)          # sequence tile index

    feat = feat_ref[0]            # (tS, C) in the HBM I/O dtype (bf16 or f32)
    feat_c = feat.astype(cdt)

    @pl.when(jnp.logical_and(p == 0, t == 0))
    def _():
        kv_acc[...] = jnp.zeros_like(kv_acc)
        ksum_acc[...] = jnp.zeros_like(ksum_acc)

    # --------- phase 0: accumulate K/V statistics over sequence tiles -------
    @pl.when(p == 0)
    def _():
        kf = _fmap(jnp.dot(feat_c, wk_ref[...],
                           preferred_element_type=jnp.float32))          # (tS, C) f32
        v = jnp.dot(feat_c, wv_ref[...],
                    preferred_element_type=jnp.float32)                  # (tS, C) f32
        ksum_acc[...] += jnp.sum(kf, axis=0, keepdims=True)              # f32 accum
        # full C x C K^T V; per-head block-diagonal masking applied once later
        kv_acc[...] += lax.dot_general(kf.astype(cdt), v.astype(cdt),
                                       (((0,), (0,)), ((), ())),
                                       preferred_element_type=jnp.float32)

    # --------- agent update (LoFTREncoderLayer), once per batch element -----
    @pl.when(jnp.logical_and(p == 1, t == 0))
    def _():
        agents_c = agents_ref[...].astype(cdt)                           # (A, C)
        blk = blk_ref[...]                                               # (C, C) cdt, 0/1
        qf = _fmap(jnp.dot(agents_c, wq_ref[...],
                           preferred_element_type=jnp.float32))          # (A, C) f32
        # keep only per-head diagonal blocks of the accumulated KV
        kv = kv_acc[...].astype(cdt) * blk                               # (C, C) cdt
        ksum = ksum_acc[...]                                             # (1, C) f32
        # per-head denominator, broadcast across each head's lanes via blk
        zden = jnp.dot((qf * ksum).astype(cdt), blk,
                       preferred_element_type=jnp.float32) + ATTN_EPS    # (A, C)
        z = _recip(zden, approx_recip)
        # note: the original v/S and *S scalings cancel exactly and are dropped
        message = jnp.dot(qf.astype(cdt), kv,
                          preferred_element_type=jnp.float32) * z        # (A, C)
        message = jnp.dot(message.astype(cdt), wm_ref[...],
                          preferred_element_type=jnp.float32)
        message = _layernorm(message, g1_ref[...], b1_ref[...])
        # MLP on cat([agents, message]) without the lane-dim concat:
        h1 = jnp.maximum(
            jnp.dot(agents_c, w1a_ref[...], preferred_element_type=jnp.float32)
            + jnp.dot(message.astype(cdt), w1b_ref[...],
                      preferred_element_type=jnp.float32), 0.0)          # (A, 2C)
        h2 = jnp.dot(h1.astype(cdt), w2_ref[...],
                     preferred_element_type=jnp.float32)                 # (A, C)
        ua = _layernorm(h2, g2_ref[...], b2_ref[...])                    # (A, C) f32

        # ---- "full_attention" setup (single head of size C): K = V = ua ----
        kf2 = _fmap(ua)                                                  # (A, C) f32
        kv2 = lax.dot_general(kf2.astype(cdt), ua.astype(cdt),
                              (((0,), (0,)), ((), ())),
                              preferred_element_type=jnp.float32)        # (C, C)
        kv2_sc[...] = kv2.astype(kv2_sc.dtype)
        ksum2_sc[...] = jnp.sum(kf2, axis=0, keepdims=True)              # (1, C) f32

    # --------- phase 1: per-tile full attention + residual -> output --------
    @pl.when(p == 1)
    def _():
        feat_f32 = feat.astype(jnp.float32)
        qf2 = _fmap(feat_f32)                                            # (tS, C) f32
        z2 = _recip(jnp.sum(qf2 * ksum2_sc[...], axis=-1, keepdims=True)
                    + ATTN_EPS, approx_recip)                            # (tS, 1)
        attn = jnp.dot(qf2.astype(cdt), kv2_sc[...],
                       preferred_element_type=jnp.float32) * z2          # (tS, C)
        feat_out_ref[0] = (feat_f32 + attn).astype(feat_out_ref.dtype)


def _pick_seq_tile(S, target):
    """Largest tS <= target that divides S and is a multiple of 8."""
    if target is None or S <= target:
        return S
    t = min(target, S)
    while t >= 8:
        if S % t == 0 and t % 8 == 0:
            return t
        t -= 1
    # TODO(synk): pad/mask ragged sequence tails instead of falling back.
    return S


def loftr_layer_update(agents, feat, params, nhead,
                       compute_dtype=jnp.bfloat16, seq_tile=512,
                       vmem_limit_bytes=None):
    """agents: (A, C); feat: (N, S, C) -> feat + full_attention(feat, ua, ua).

    feat may be bf16 (recommended perf path: produce it upstream in bf16);
    all reductions / LayerNorms / residual stay in f32 inside the kernel.
    """
    N, S, C = feat.shape
    A = agents.shape[0]
    cdt = compute_dtype
    approx = jnp.dtype(cdt) != jnp.dtype(jnp.float32)

    tS = _pick_seq_tile(S, seq_tile)
    T = S // tS

    if vmem_limit_bytes is None:
        # headroom under v7x's 64 MiB/TC physical VMEM; harmless on v5e/v6e.
        vmem_limit_bytes = 48 * 1024 * 1024

    # Cast weights at the boundary: halves weight DMA in the bf16 path (same
    # rounding as an in-kernel cast). LN params stay f32.
    wq = params['wq'].astype(cdt)
    wk = params['wk'].astype(cdt)
    wv = params['wv'].astype(cdt)
    wm = params['wm'].astype(cdt)
    w1a = params['w1'][:C].astype(cdt)     # acts on the `agents` half of the concat
    w1b = params['w1'][C:].astype(cdt)     # acts on the `message` half
    w2 = params['w2'].astype(cdt)

    # block-diagonal head mask, precomputed once (hoisted out of the kernel)
    d = C // nhead
    head = jnp.arange(C) // d
    blk = (head[:, None] == head[None, :]).astype(cdt)                  # (C, C)
    # TODO(synk): on v5e (MXU-bound) replace the masked full-C KV with nhead
    # per-head (D,S)@(S,D) accumulations to recover the 8x flop waste.

    kernel = functools.partial(loftr_kernel, compute_dtype=cdt,
                               approx_recip=approx)

    def const2d(shape):
        return pl.BlockSpec(shape, lambda n, p, t: (0, 0))

    in_specs = [
        const2d((A, C)),                                      # agents
        pl.BlockSpec((1, tS, C), lambda n, p, t: (n, t, 0)),  # feat tile (both phases)
        const2d((C, C)),                                      # head mask
        const2d((C, C)), const2d((C, C)), const2d((C, C)), const2d((C, C)),
        const2d((C, 2 * C)), const2d((C, 2 * C)), const2d((2 * C, C)),
        const2d((1, C)), const2d((1, C)), const2d((1, C)), const2d((1, C)),
    ]
    # phase 0: output block pinned at tile 0 (resident, never written back),
    # phase 1: per-tile writeback of the computed output tile.
    out_specs = pl.BlockSpec((1, tS, C), lambda n, p, t: (n, t * p, 0))
    out_shape = jax.ShapeDtypeStruct((N, S, C), feat.dtype)

    scratch_shapes = [
        pltpu.VMEM((C, C), jnp.float32),   # KV accumulator (masked at use)
        pltpu.VMEM((1, C), jnp.float32),   # Ksum accumulator
        pltpu.VMEM((C, C), cdt),           # KV2 (full-attention) carried to phase 1
        pltpu.VMEM((1, C), jnp.float32),   # Ksum2
    ]

    # TODO(synk): if the per-tile feat DMA is still exposed in the trace at
    # production sizes, add pipeline_mode=pl.Buffered(3) to the feat BlockSpec.
    return pl.pallas_call(
        kernel,
        out_shape=out_shape,
        grid_spec=pltpu.PrefetchScalarGridSpec(
            num_scalar_prefetch=0,
            grid=(N, 2, T),
            in_specs=in_specs,
            out_specs=out_specs,
            scratch_shapes=scratch_shapes),
        compiler_params=pltpu.CompilerParams(
            dimension_semantics=("parallel", "arbitrary", "arbitrary"),
            vmem_limit_bytes=vmem_limit_bytes),
    )(agents, feat, blk, wq, wk, wv, wm, w1a, w1b, w2,
      params['g1'], params['b1'], params['g2'], params['b2'])


def local_feature_transformer(agents, feat0, feat1, params, nhead,
                              compute_dtype=jnp.bfloat16, seq_tile=512):
    """Equivalent of LocalFeatureTransformer.forward with feat1 is not None
    and masks = None."""
    # TODO(synk): optional mask0/mask1 paths and the feat1-is-None branch
    # (which returns updated agents) are not exercised in this setup.
    assert feat1 is not None
    # Two separate calls (no feat concat: it costs a full extra HBM read+write
    # of the HBM-bound feature maps just to share ~1 MiB of weight DMA).
    f0 = loftr_layer_update(agents, feat0, params, nhead, compute_dtype, seq_tile)
    f1 = loftr_layer_update(agents, feat1, params, nhead, compute_dtype, seq_tile)
    return f0, f1


# ----------------------- pure-JAX reference (for checking) ------------------
def _linear_attention_ref(q, k, v):
    Q = _fmap(q)
    K = _fmap(k)
    S = v.shape[1]
    v = v / S
    KV = jnp.einsum('nshd,nshv->nhdv', K, v)
    Z = 1.0 / (jnp.einsum('nlhd,nhd->nlh', Q, K.sum(axis=1)) + ATTN_EPS)
    return jnp.einsum('nlhd,nhdv,nlh->nlhv', Q, KV, Z) * S


def _encoder_layer_ref(x, source, params, nhead):
    N, L, C = x.shape
    D = C // nhead
    q = (x @ params['wq']).reshape(N, L, nhead, D)
    k = (source @ params['wk']).reshape(N, -1, nhead, D)
    v = (source @ params['wv']).reshape(N, -1, nhead, D)
    msg = _linear_attention_ref(q, k, v).reshape(N, L, C)
    msg = msg @ params['wm']
    msg = _layernorm(msg, params['g1'], params['b1'])
    cat = jnp.concatenate([x, msg], axis=-1)
    h = jnp.maximum(cat @ params['w1'], 0.0) @ params['w2']
    return _layernorm(h, params['g2'], params['b2'])


def _transformer_ref(agents, feat0, feat1, params, nhead):
    b = feat0.shape[0]
    ag = jnp.broadcast_to(agents[None], (b,) + agents.shape)
    ua0 = _encoder_layer_ref(ag, feat0, params, nhead)
    ua1 = _encoder_layer_ref(ag, feat1, params, nhead)
    A0 = _linear_attention_ref(feat0[:, :, None, :], ua0[:, :, None, :],
                               ua0[:, :, None, :])
    A1 = _linear_attention_ref(feat1[:, :, None, :], ua1[:, :, None, :],
                               ua1[:, :, None, :])
    return feat0 + A0[:, :, 0, :], feat1 + A1[:, :, 0, :]


# ------------------------------- setup / main --------------------------------
def _xavier_t(key, fan_in, fan_out):
    # PyTorch weight is [out, in] with y = x @ W^T; we generate the transposed
    # [in, out] weight directly with the same xavier_uniform bound.
    a = (6.0 / (fan_in + fan_out)) ** 0.5
    return jax.random.uniform(key, (fan_in, fan_out), jnp.float32, -a, a)


if __name__ == "__main__":
    key = jax.random.PRNGKey(0)
    N, A, L, S, C, H = 2, 8, 16, 16, 32, 4   # batch, agents, seq0, seq1, d_model, nhead
    ks = jax.random.split(key, 9)

    params = {
        'wq': _xavier_t(ks[0], C, C),
        'wk': _xavier_t(ks[1], C, C),
        'wv': _xavier_t(ks[2], C, C),
        'wm': _xavier_t(ks[3], C, C),
        'w1': _xavier_t(ks[4], 2 * C, 2 * C),
        'w2': _xavier_t(ks[5], 2 * C, C),
        'g1': jnp.ones((1, C), jnp.float32),   # LayerNorm params (default init)
        'b1': jnp.zeros((1, C), jnp.float32),
        'g2': jnp.ones((1, C), jnp.float32),
        'b2': jnp.zeros((1, C), jnp.float32),
    }

    agents = jax.random.normal(ks[6], (A, C), jnp.float32)      # [1, A, C] squeezed
    feat0 = jax.random.normal(ks[7], (N, L, C), jnp.float32)
    feat1 = jax.random.normal(ks[8], (N, S, C), jnp.float32)

    r0, r1 = _transformer_ref(agents, feat0, feat1, params, H)

    # Tight structural check: f32 compute path (exact divide, f32 feat I/O),
    # seq_tile=8 so the two-sweep S-tiling is actually exercised (T=2 tiles).
    f0, f1 = local_feature_transformer(agents, feat0, feat1, params, H,
                                       compute_dtype=jnp.float32, seq_tile=8)
    jax.block_until_ready((f0, f1))
    assert f0.shape == feat0.shape and f1.shape == feat1.shape
    assert jnp.allclose(f0, r0, atol=1e-4, rtol=1e-4)
    assert jnp.allclose(f1, r1, atol=1e-4, rtol=1e-4)

    # Performance path: bf16 feat HBM I/O + bf16 MXU operands with f32
    # accumulation and approx reciprocals (looser check).
    g0, g1 = local_feature_transformer(agents,
                                       feat0.astype(jnp.bfloat16),
                                       feat1.astype(jnp.bfloat16),
                                       params, H,
                                       compute_dtype=jnp.bfloat16, seq_tile=8)
    jax.block_until_ready((g0, g1))
    assert g0.dtype == jnp.bfloat16 and g1.dtype == jnp.bfloat16
    assert jnp.allclose(g0.astype(jnp.float32), r0, atol=2e-1, rtol=1e-1)
    assert jnp.allclose(g1.astype(jnp.float32), r1, atol=2e-1, rtol=1e-1)

    print("KERNEL_OK")
</pallas_src>

<mosaic_0001>
module attributes {stable_mosaic.version = 11 : i64} {
  func.func @loftr_kernel(%arg0: i32, %arg1: i32, %arg2: i32, %arg3: memref<8x32xf32, #tpu.memory_space<vmem>>, %arg4: memref<1x8x32xf32, #tpu.memory_space<vmem>>, %arg5: memref<32x32xf32, #tpu.memory_space<vmem>>, %arg6: memref<32x32xf32, #tpu.memory_space<vmem>>, %arg7: memref<32x32xf32, #tpu.memory_space<vmem>>, %arg8: memref<32x32xf32, #tpu.memory_space<vmem>>, %arg9: memref<32x32xf32, #tpu.memory_space<vmem>>, %arg10: memref<32x64xf32, #tpu.memory_space<vmem>>, %arg11: memref<32x64xf32, #tpu.memory_space<vmem>>, %arg12: memref<64x32xf32, #tpu.memory_space<vmem>>, %arg13: memref<1x32xf32, #tpu.memory_space<vmem>>, %arg14: memref<1x32xf32, #tpu.memory_space<vmem>>, %arg15: memref<1x32xf32, #tpu.memory_space<vmem>>, %arg16: memref<1x32xf32, #tpu.memory_space<vmem>>, %arg17: memref<1x8x32xf32, #tpu.memory_space<vmem>>, %arg18: memref<32x32xf32, #tpu.memory_space<vmem>>, %arg19: memref<1x32xf32, #tpu.memory_space<vmem>>, %arg20: memref<32x32xf32, #tpu.memory_space<vmem>>, %arg21: memref<1x32xf32, #tpu.memory_space<vmem>>) attributes {dimension_semantics = [#tpu.dimension_semantics<parallel>, #tpu.dimension_semantics<arbitrary>, #tpu.dimension_semantics<arbitrary>], iteration_bounds = array<i64: 2, 2, 2>, scalar_prefetch = 0 : i64, scratch_operands = 4 : i64, tpu.core_type = #tpu.core_type<tc>, window_params = [{pipeline_mode = #tpu.pipeline_mode<synchronous>, transform_indices = @transform_0, window_bounds = array<i64: 8, 32>}, {transform_indices = @transform_1, window_bounds = array<i64: 1, 8, 32>}, {pipeline_mode = #tpu.pipeline_mode<synchronous>, transform_indices = @transform_2, window_bounds = array<i64: 32, 32>}, {pipeline_mode = #tpu.pipeline_mode<synchronous>, transform_indices = @transform_3, window_bounds = array<i64: 32, 32>}, {pipeline_mode = #tpu.pipeline_mode<synchronous>, transform_indices = @transform_4, window_bounds = array<i64: 32, 32>}, {pipeline_mode = #tpu.pipeline_mode<synchronous>, transform_indices = @transform_5, window_bounds = array<i64: 32, 32>}, {pipeline_mode = #tpu.pipeline_mode<synchronous>, transform_indices = @transform_6, window_bounds = array<i64: 32, 32>}, {pipeline_mode = #tpu.pipeline_mode<synchronous>, transform_indices = @transform_7, window_bounds = array<i64: 32, 64>}, {pipeline_mode = #tpu.pipeline_mode<synchronous>, transform_indices = @transform_8, window_bounds = array<i64: 32, 64>}, {pipeline_mode = #tpu.pipeline_mode<synchronous>, transform_indices = @transform_9, window_bounds = array<i64: 64, 32>}, {pipeline_mode = #tpu.pipeline_mode<synchronous>, transform_indices = @transform_10, window_bounds = array<i64: 1, 32>}, {pipeline_mode = #tpu.pipeline_mode<synchronous>, transform_indices = @transform_11, window_bounds = array<i64: 1, 32>}, {pipeline_mode = #tpu.pipeline_mode<synchronous>, transform_indices = @transform_12, window_bounds = array<i64: 1, 32>}, {pipeline_mode = #tpu.pipeline_mode<synchronous>, transform_indices = @transform_13, window_bounds = array<i64: 1, 32>}, {transform_indices = @transform_14, window_bounds = array<i64: 1, 8, 32>}]} {
    %c0 = arith.constant 0 : index
    %c0_0 = arith.constant 0 : index
    %c0_1 = arith.constant 0 : index
    %0 = vector.load %arg4[%c0, %c0_0, %c0_1] : memref<1x8x32xf32, #tpu.memory_space<vmem>>, vector<1x8x32xf32>
    %1 = vector.shape_cast %0 : vector<1x8x32xf32> to vector<8x32xf32>
    %c0_i32 = arith.constant 0 : i32
    %2 = arith.cmpi eq, %arg1, %c0_i32 : i32
    %c0_i32_2 = arith.constant 0 : i32
    %3 = arith.cmpi eq, %arg2, %c0_i32_2 : i32
    %4 = arith.andi %2, %3 : i1
    %5 = arith.extui %4 : i1 to i32
    %c0_i32_3 = arith.constant 0 : i32
    %6 = arith.cmpi ne, %5, %c0_i32_3 : i32
    scf.if %6 {
      %cst = arith.constant 0.000000e+00 : f32
      %18 = vector.broadcast %cst : f32 to vector<32x32xf32>
      %c0_10 = arith.constant 0 : index
      %c0_11 = arith.constant 0 : index
      %19 = vector.load %arg18[%c0_10, %c0_11] : memref<32x32xf32, #tpu.memory_space<vmem>>, vector<32x32xf32>
      tpu.vector_store %arg18[%c0_10, %c0_11], %18 {strides = array<i32>} : memref<32x32xf32, #tpu.memory_space<vmem>>, vector<32x32xf32>,
      %cst_12 = arith.constant 0.000000e+00 : f32
      %20 = vector.broadcast %cst_12 : f32 to vector<1x32xf32>
      %c0_13 = arith.constant 0 : index
      %c0_14 = arith.constant 0 : index
      %21 = vector.load %arg19[%c0_13, %c0_14] : memref<1x32xf32, #tpu.memory_space<vmem>>, vector<1x32xf32>
      tpu.vector_store %arg19[%c0_13, %c0_14], %20 {strides = array<i32>} : memref<1x32xf32, #tpu.memory_space<vmem>>, vector<1x32xf32>,
    } else {
    }
    %c0_i32_4 = arith.constant 0 : i32
    %7 = arith.cmpi eq, %arg1, %c0_i32_4 : i32
    %8 = arith.extui %7 : i1 to i32
    %c0_i32_5 = arith.constant 0 : i32
    %9 = arith.cmpi ne, %8, %c0_i32_5 : i32
    scf.if %9 {
      %c0_10 = arith.constant 0 : index
      %c0_11 = arith.constant 0 : index
      %18 = vector.load %arg7[%c0_10, %c0_11] : memref<32x32xf32, #tpu.memory_space<vmem>>, vector<32x32xf32>
      %cst = arith.constant dense<0.000000e+00> : vector<8x32xf32>
      %19 = tpu.matmul %1, %18, %cst {dimension_numbers = #tpu.dot_dimension_numbers<[1], [0], [0], [1], [0, 0, 1, 1], [], []>} : vector<8x32xf32>, vector<32x32xf32>, vector<8x32xf32> -> vector<8x32xf32>
      %cst_12 = arith.constant 0.000000e+00 : f32
      %20 = vector.broadcast %cst_12 : f32 to vector<8x32xf32>
      %21 = arith.cmpf ogt, %19, %20 : vector<8x32xf32>
      %cst_13 = arith.constant 1.000000e+00 : f32
      %22 = vector.broadcast %cst_13 : f32 to vector<8x32xf32>
      %23 = arith.addf %19, %22 : vector<8x32xf32>
      %24 = math.exp %19 : vector<8x32xf32>
      %25 = arith.select %21, %23, %24 : vector<8x32xi1>, vector<8x32xf32>
      %c0_14 = arith.constant 0 : index
      %c0_15 = arith.constant 0 : index
      %26 = vector.load %arg8[%c0_14, %c0_15] : memref<32x32xf32, #tpu.memory_space<vmem>>, vector<32x32xf32>
      %cst_16 = arith.constant dense<0.000000e+00> : vector<8x32xf32>
      %27 = tpu.matmul %1, %26, %cst_16 {dimension_numbers = #tpu.dot_dimension_numbers<[1], [0], [0], [1], [0, 0, 1, 1], [], []>} : vector<8x32xf32>, vector<32x32xf32>, vector<8x32xf32> -> vector<8x32xf32>
      %c0_17 = arith.constant 0 : index
      %c0_18 = arith.constant 0 : index
      %28 = vector.load %arg19[%c0_17, %c0_18] : memref<1x32xf32, #tpu.memory_space<vmem>>, vector<1x32xf32>
      %cst_19 = arith.constant dense<0.000000e+00> : vector<32xf32>
      %29 = vector.multi_reduction <add>, %25, %cst_19 [0] : vector<8x32xf32> to vector<32xf32>
      %30 = vector.shape_cast %29 : vector<32xf32> to vector<1x32xf32>
      %31 = arith.addf %28, %30 : vector<1x32xf32>
      %c0_20 = arith.constant 0 : index
      %c0_21 = arith.constant 0 : index
      %32 = vector.load %arg19[%c0_20, %c0_21] : memref<1x32xf32, #tpu.memory_space<vmem>>, vector<1x32xf32>
      tpu.vector_store %arg19[%c0_20, %c0_21], %31 {strides = array<i32>} : memref<1x32xf32, #tpu.memory_space<vmem>>, vector<1x32xf32>,
      %c0_22 = arith.constant 0 : index
      %c0_23 = arith.constant 0 : index
      %33 = vector.load %arg18[%c0_22, %c0_23] : memref<32x32xf32, #tpu.memory_space<vmem>>, vector<32x32xf32>
      %cst_24 = arith.constant dense<0.000000e+00> : vector<32x32xf32>
      %34 = tpu.matmul %25, %27, %cst_24 {dimension_numbers = #tpu.dot_dimension_numbers<[0], [0], [1], [1], [0, 1, 1, 1], [], []>} : vector<8x32xf32>, vector<8x32xf32>, vector<32x32xf32> -> vector<32x32xf32>
      %35 = arith.addf %33, %34 : vector<32x32xf32>
      %c0_25 = arith.constant 0 : index
      %c0_26 = arith.constant 0 : index
      %36 = vector.load %arg18[%c0_25, %c0_26] : memref<32x32xf32, #tpu.memory_space<vmem>>, vector<32x32xf32>
      tpu.vector_store %arg18[%c0_25, %c0_26], %35 {strides = array<i32>} : memref<32x32xf32, #tpu.memory_space<vmem>>, vector<32x32xf32>,
    } else {
    }
    %c1_i32 = arith.constant 1 : i32
    %10 = arith.cmpi eq, %arg1, %c1_i32 : i32
    %c0_i32_6 = arith.constant 0 : i32
    %11 = arith.cmpi eq, %arg2, %c0_i32_6 : i32
    %12 = arith.andi %10, %11 : i1
    %13 = arith.extui %12 : i1 to i32
    %c0_i32_7 = arith.constant 0 : i32
    %14 = arith.cmpi ne, %13, %c0_i32_7 : i32
    scf.if %14 {
      %c0_10 = arith.constant 0 : index
      %c0_11 = arith.constant 0 : index
      %18 = vector.load %arg3[%c0_10, %c0_11] : memref<8x32xf32, #tpu.memory_space<vmem>>, vector<8x32xf32>
      %c0_12 = arith.constant 0 : index
      %c0_13 = arith.constant 0 : index
      %19 = vector.load %arg5[%c0_12, %c0_13] : memref<32x32xf32, #tpu.memory_space<vmem>>, vector<32x32xf32>
      %c0_14 = arith.constant 0 : index
      %c0_15 = arith.constant 0 : index
      %20 = vector.load %arg6[%c0_14, %c0_15] : memref<32x32xf32, #tpu.memory_space<vmem>>, vector<32x32xf32>
      %cst = arith.constant dense<0.000000e+00> : vector<8x32xf32>
      %21 = tpu.matmul %18, %20, %cst {dimension_numbers = #tpu.dot_dimension_numbers<[1], [0], [0], [1], [0, 0, 1, 1], [], []>} : vector<8x32xf32>, vector<32x32xf32>, vector<8x32xf32> -> vector<8x32xf32>
      %cst_16 = arith.constant 0.000000e+00 : f32
      %22 = vector.broadcast %cst_16 : f32 to vector<8x32xf32>
      %23 = arith.cmpf ogt, %21, %22 : vector<8x32xf32>
      %cst_17 = arith.constant 1.000000e+00 : f32
      %24 = vector.broadcast %cst_17 : f32 to vector<8x32xf32>
      %25 = arith.addf %21, %24 : vector<8x32xf32>
      %26 = math.exp %21 : vector<8x32xf32>
      %27 = arith.select %23, %25, %26 : vector<8x32xi1>, vector<8x32xf32>
      %c0_18 = arith.constant 0 : index
      %c0_19 = arith.constant 0 : index
      %28 = vector.load %arg18[%c0_18, %c0_19] : memref<32x32xf32, #tpu.memory_space<vmem>>, vector<32x32xf32>
      %29 = arith.mulf %28, %19 : vector<32x32xf32>
      %c0_20 = arith.constant 0 : index
      %c0_21 = arith.constant 0 : index
      %30 = vector.load %arg19[%c0_20, %c0_21] : memref<1x32xf32, #tpu.memory_space<vmem>>, vector<1x32xf32>
      %31 = vector.broadcast %30 : vector<1x32xf32> to vector<8x32xf32>
      %32 = arith.mulf %27, %31 : vector<8x32xf32>
      %cst_22 = arith.constant dense<0.000000e+00> : vector<8x32xf32>
      %33 = tpu.matmul %32, %19, %cst_22 {dimension_numbers = #tpu.dot_dimension_numbers<[1], [0], [0], [1], [0, 0, 1, 1], [], []>} : vector<8x32xf32>, vector<32x32xf32>, vector<8x32xf32> -> vector<8x32xf32>
      %cst_23 = arith.constant 9.99999997E-7 : f32
      %34 = vector.broadcast %cst_23 : f32 to vector<8x32xf32>
      %35 = arith.addf %33, %34 : vector<8x32xf32>
      %cst_24 = arith.constant 1.000000e+00 : f32
      %36 = vector.broadcast %cst_24 : f32 to vector<8x32xf32>
      %37 = arith.divf %36, %35 : vector<8x32xf32>
      %cst_25 = arith.constant dense<0.000000e+00> : vector<8x32xf32>
      %38 = tpu.matmul %27, %29, %cst_25 {dimension_numbers = #tpu.dot_dimension_numbers<[1], [0], [0], [1], [0, 0, 1, 1], [], []>} : vector<8x32xf32>, vector<32x32xf32>, vector<8x32xf32> -> vector<8x32xf32>
      %39 = arith.mulf %38, %37 : vector<8x32xf32>
      %c0_26 = arith.constant 0 : index
      %c0_27 = arith.constant 0 : index
      %40 = vector.load %arg9[%c0_26, %c0_27] : memref<32x32xf32, #tpu.memory_space<vmem>>, vector<32x32xf32>
      %cst_28 = arith.constant dense<0.000000e+00> : vector<8x32xf32>
      %41 = tpu.matmul %39, %40, %cst_28 {dimension_numbers = #tpu.dot_dimension_numbers<[1], [0], [0], [1], [0, 0, 1, 1], [], []>} : vector<8x32xf32>, vector<32x32xf32>, vector<8x32xf32> -> vector<8x32xf32>
      %c0_29 = arith.constant 0 : index
      %c0_30 = arith.constant 0 : index
      %42 = vector.load %arg13[%c0_29, %c0_30] : memref<1x32xf32, #tpu.memory_space<vmem>>, vector<1x32xf32>
      %c0_31 = arith.constant 0 : index
      %c0_32 = arith.constant 0 : index
      %43 = vector.load %arg14[%c0_31, %c0_32] : memref<1x32xf32, #tpu.memory_space<vmem>>, vector<1x32xf32>
      %cst_33 = arith.constant dense<0.000000e+00> : vector<8xf32>
      %44 = vector.multi_reduction <add>, %41, %cst_33 [1] : vector<8x32xf32> to vector<8xf32>
      %45 = vector.shape_cast %44 : vector<8xf32> to vector<8x1xf32>
      %cst_34 = arith.constant 3.200000e+01 : f32
      %46 = vector.broadcast %cst_34 : f32 to vector<8x1xf32>
      %47 = arith.divf %45, %46 : vector<8x1xf32>
      %48 = vector.broadcast %47 : vector<8x1xf32> to vector<8x32xf32>
      %49 = arith.subf %41, %48 : vector<8x32xf32>
      %50 = arith.mulf %49, %49 : vector<8x32xf32>
      %cst_35 = arith.constant dense<0.000000e+00> : vector<8xf32>
      %51 = vector.multi_reduction <add>, %50, %cst_35 [1] : vector<8x32xf32> to vector<8xf32>
      %52 = vector.shape_cast %51 : vector<8xf32> to vector<8x1xf32>
      %cst_36 = arith.constant 3.200000e+01 : f32
      %53 = vector.broadcast %cst_36 : f32 to vector<8x1xf32>
      %54 = arith.divf %52, %53 : vector<8x1xf32>
      %55 = vector.broadcast %47 : vector<8x1xf32> to vector<8x32xf32>
      %56 = arith.subf %41, %55 : vector<8x32xf32>
      %cst_37 = arith.constant 9.99999974E-6 : f32
      %57 = vector.broadcast %cst_37 : f32 to vector<8x1xf32>
      %58 = arith.addf %54, %57 : vector<8x1xf32>
      %59 = math.rsqrt %58 : vector<8x1xf32>
      %60 = vector.broadcast %59 : vector<8x1xf32> to vector<8x32xf32>
      %61 = arith.mulf %56, %60 : vector<8x32xf32>
      %62 = vector.broadcast %42 : vector<1x32xf32> to vector<8x32xf32>
      %63 = arith.mulf %61, %62 : vector<8x32xf32>
      %64 = vector.broadcast %43 : vector<1x32xf32> to vector<8x32xf32>
      %65 = arith.addf %63, %64 : vector<8x32xf32>
      %c0_38 = arith.constant 0 : index
      %c0_39 = arith.constant 0 : index
      %66 = vector.load %arg10[%c0_38, %c0_39] : memref<32x64xf32, #tpu.memory_space<vmem>>, vector<32x64xf32>
      %cst_40 = arith.constant dense<0.000000e+00> : vector<8x64xf32>
      %67 = tpu.matmul %18, %66, %cst_40 {dimension_numbers = #tpu.dot_dimension_numbers<[1], [0], [0], [1], [0, 0, 1, 1], [], []>} : vector<8x32xf32>, vector<32x64xf32>, vector<8x64xf32> -> vector<8x64xf32>
      %c0_41 = arith.constant 0 : index
      %c0_42 = arith.constant 0 : index
      %68 = vector.load %arg11[%c0_41, %c0_42] : memref<32x64xf32, #tpu.memory_space<vmem>>, vector<32x64xf32>
      %cst_43 = arith.constant dense<0.000000e+00> : vector<8x64xf32>
      %69 = tpu.matmul %65, %68, %cst_43 {dimension_numbers = #tpu.dot_dimension_numbers<[1], [0], [0], [1], [0, 0, 1, 1], [], []>} : vector<8x32xf32>, vector<32x64xf32>, vector<8x64xf32> -> vector<8x64xf32>
      %70 = arith.addf %67, %69 : vector<8x64xf32>
      %cst_44 = arith.constant 0.000000e+00 : f32
      %71 = vector.broadcast %cst_44 : f32 to vector<8x64xf32>
      %72 = arith.maximumf %70, %71 : vector<8x64xf32>
      %c0_45 = arith.constant 0 : index
      %c0_46 = arith.constant 0 : index
      %73 = vector.load %arg12[%c0_45, %c0_46] : memref<64x32xf32, #tpu.memory_space<vmem>>, vector<64x32xf32>
      %cst_47 = arith.constant dense<0.000000e+00> : vector<8x32xf32>
      %74 = tpu.matmul %72, %73, %cst_47 {dimension_numbers = #tpu.dot_dimension_numbers<[1], [0], [0], [1], [0, 0, 1, 1], [], []>} : vector<8x64xf32>, vector<64x32xf32>, vector<8x32xf32> -> vector<8x32xf32>
      %c0_48 = arith.constant 0 : index
      %c0_49 = arith.constant 0 : index
      %75 = vector.load %arg15[%c0_48, %c0_49] : memref<1x32xf32, #tpu.memory_space<vmem>>, vector<1x32xf32>
      %c0_50 = arith.constant 0 : index
      %c0_51 = arith.constant 0 : index
      %76 = vector.load %arg16[%c0_50, %c0_51] : memref<1x32xf32, #tpu.memory_space<vmem>>, vector<1x32xf32>
      %cst_52 = arith.constant dense<0.000000e+00> : vector<8xf32>
      %77 = vector.multi_reduction <add>, %74, %cst_52 [1] : vector<8x32xf32> to vector<8xf32>
      %78 = vector.shape_cast %77 : vector<8xf32> to vector<8x1xf32>
      %cst_53 = arith.constant 3.200000e+01 : f32
      %79 = vector.broadcast %cst_53 : f32 to vector<8x1xf32>
      %80 = arith.divf %78, %79 : vector<8x1xf32>
      %81 = vector.broadcast %80 : vector<8x1xf32> to vector<8x32xf32>
      %82 = arith.subf %74, %81 : vector<8x32xf32>
      %83 = arith.mulf %82, %82 : vector<8x32xf32>
      %cst_54 = arith.constant dense<0.000000e+00> : vector<8xf32>
      %84 = vector.multi_reduction <add>, %83, %cst_54 [1] : vector<8x32xf32> to vector<8xf32>
      %85 = vector.shape_cast %84 : vector<8xf32> to vector<8x1xf32>
      %cst_55 = arith.constant 3.200000e+01 : f32
      %86 = vector.broadcast %cst_55 : f32 to vector<8x1xf32>
      %87 = arith.divf %85, %86 : vector<8x1xf32>
      %88 = vector.broadcast %80 : vector<8x1xf32> to vector<8x32xf32>
      %89 = arith.subf %74, %88 : vector<8x32xf32>
      %cst_56 = arith.constant 9.99999974E-6 : f32
      %90 = vector.broadcast %cst_56 : f32 to vector<8x1xf32>
      %91 = arith.addf %87, %90 : vector<8x1xf32>
      %92 = math.rsqrt %91 : vector<8x1xf32>
      %93 = vector.broadcast %92 : vector<8x1xf32> to vector<8x32xf32>
      %94 = arith.mulf %89, %93 : vector<8x32xf32>
      %95 = vector.broadcast %75 : vector<1x32xf32> to vector<8x32xf32>
      %96 = arith.mulf %94, %95 : vector<8x32xf32>
      %97 = vector.broadcast %76 : vector<1x32xf32> to vector<8x32xf32>
      %98 = arith.addf %96, %97 : vector<8x32xf32>
      %cst_57 = arith.constant 0.000000e+00 : f32
      %99 = vector.broadcast %cst_57 : f32 to vector<8x32xf32>
      %100 = arith.cmpf ogt, %98, %99 : vector<8x32xf32>
      %cst_58 = arith.constant 1.000000e+00 : f32
      %101 = vector.broadcast %cst_58 : f32 to vector<8x32xf32>
      %102 = arith.addf %98, %101 : vector<8x32xf32>
      %103 = math.exp %98 : vector<8x32xf32>
      %104 = arith.select %100, %102, %103 : vector<8x32xi1>, vector<8x32xf32>
      %cst_59 = arith.constant dense<0.000000e+00> : vector<32x32xf32>
      %105 = tpu.matmul %104, %98, %cst_59 {dimension_numbers = #tpu.dot_dimension_numbers<[0], [0], [1], [1], [0, 1, 1, 1], [], []>} : vector<8x32xf32>, vector<8x32xf32>, vector<32x32xf32> -> vector<32x32xf32>
      %c0_60 = arith.constant 0 : index
      %c0_61 = arith.constant 0 : index
      %106 = vector.load %arg20[%c0_60, %c0_61] : memref<32x32xf32, #tpu.memory_space<vmem>>, vector<32x32xf32>
      tpu.vector_store %arg20[%c0_60, %c0_61], %105 {strides = array<i32>} : memref<32x32xf32, #tpu.memory_space<vmem>>, vector<32x32xf32>,
      %cst_62 = arith.constant dense<0.000000e+00> : vector<32xf32>
      %107 = vector.multi_reduction <add>, %104, %cst_62 [0] : vector<8x32xf32> to vector<32xf32>
      %108 = vector.shape_cast %107 : vector<32xf32> to vector<1x32xf32>
      %c0_63 = arith.constant 0 : index
      %c0_64 = arith.constant 0 : index
      %109 = vector.load %arg21[%c0_63, %c0_64] : memref<1x32xf32, #tpu.memory_space<vmem>>, vector<1x32xf32>
      tpu.vector_store %arg21[%c0_63, %c0_64], %108 {strides = array<i32>} : memref<1x32xf32, #tpu.memory_space<vmem>>, vector<1x32xf32>,
    } else {
    }
    %c1_i32_8 = arith.constant 1 : i32
    %15 = arith.cmpi eq, %arg1, %c1_i32_8 : i32
    %16 = arith.extui %15 : i1 to i32
    %c0_i32_9 = arith.constant 0 : i32
    %17 = arith.cmpi ne, %16, %c0_i32_9 : i32
    scf.if %17 {
      %cst = arith.constant 0.000000e+00 : f32
      %18 = vector.broadcast %cst : f32 to vector<8x32xf32>
      %19 = arith.cmpf ogt, %1, %18 : vector<8x32xf32>
      %cst_10 = arith.constant 1.000000e+00 : f32
      %20 = vector.broadcast %cst_10 : f32 to vector<8x32xf32>
      %21 = arith.addf %1, %20 : vector<8x32xf32>
      %22 = math.exp %1 : vector<8x32xf32>
      %23 = arith.select %19, %21, %22 : vector<8x32xi1>, vector<8x32xf32>
      %c0_11 = arith.constant 0 : index
      %c0_12 = arith.constant 0 : index
      %24 = vector.load %arg21[%c0_11, %c0_12] : memref<1x32xf32, #tpu.memory_space<vmem>>, vector<1x32xf32>
      %25 = vector.broadcast %24 : vector<1x32xf32> to vector<8x32xf32>
      %26 = arith.mulf %23, %25 : vector<8x32xf32>
      %cst_13 = arith.constant dense<0.000000e+00> : vector<8xf32>
      %27 = vector.multi_reduction <add>, %26, %cst_13 [1] : vector<8x32xf32> to vector<8xf32>
      %28 = vector.shape_cast %27 : vector<8xf32> to vector<8x1xf32>
      %cst_14 = arith.constant 9.99999997E-7 : f32
      %29 = vector.broadcast %cst_14 : f32 to vector<8x1xf32>
      %30 = arith.addf %28, %29 : vector<8x1xf32>
      %cst_15 = arith.constant 1.000000e+00 : f32
      %31 = vector.broadcast %cst_15 : f32 to vector<8x1xf32>
      %32 = arith.divf %31, %30 : vector<8x1xf32>
      %c0_16 = arith.constant 0 : index
      %c0_17 = arith.constant 0 : index
      %33 = vector.load %arg20[%c0_16, %c0_17] : memref<32x32xf32, #tpu.memory_space<vmem>>, vector<32x32xf32>
      %cst_18 = arith.constant dense<0.000000e+00> : vector<8x32xf32>
      %34 = tpu.matmul %23, %33, %cst_18 {dimension_numbers = #tpu.dot_dimension_numbers<[1], [0], [0], [1], [0, 0, 1, 1], [], []>} : vector<8x32xf32>, vector<32x32xf32>, vector<8x32xf32> -> vector<8x32xf32>
      %35 = vector.broadcast %32 : vector<8x1xf32> to vector<8x32xf32>
      %36 = arith.mulf %34, %35 : vector<8x32xf32>
      %37 = arith.addf %1, %36 : vector<8x32xf32>
      %c0_19 = arith.constant 0 : index
      %c0_20 = arith.constant 0 : index
      %c0_21 = arith.constant 0 : index
      %38 = vector.load %arg17[%c0_19, %c0_20, %c0_21] : memref<1x8x32xf32, #tpu.memory_space<vmem>>, vector<1x8x32xf32>
      %39 = vector.shape_cast %38 : vector<1x8x32xf32> to vector<8x32xf32>
      %40 = vector.shape_cast %37 : vector<8x32xf32> to vector<1x8x32xf32>
      tpu.vector_store %arg17[%c0_19, %c0_20, %c0_21], %40 {strides = array<i32>} : memref<1x8x32xf32, #tpu.memory_space<vmem>>, vector<1x8x32xf32>,
    } else {
    }
    return
  }
  func.func @transform_0(%arg0: i32, %arg1: i32, %arg2: i32) -> (i32, i32) {
    %c0_i32 = arith.constant 0 : i32
    %c0_i32_0 = arith.constant 0 : i32
    %c0_i32_1 = arith.constant 0 : i32
    return %c0_i32, %c0_i32_0 : i32, i32
  }
  func.func @transform_1(%arg0: i32, %arg1: i32, %arg2: i32) -> (i32, i32, i32) {
    %c0_i32 = arith.constant 0 : i32
    %c0_i32_0 = arith.constant 0 : i32
    return %arg0, %arg2, %c0_i32 : i32, i32, i32
  }
  func.func @transform_2(%arg0: i32, %arg1: i32, %arg2: i32) -> (i32, i32) {
    %c0_i32 = arith.constant 0 : i32
    %c0_i32_0 = arith.constant 0 : i32
    %c0_i32_1 = arith.constant 0 : i32
    return %c0_i32, %c0_i32_0 : i32, i32
  }
  func.func @transform_3(%arg0: i32, %arg1: i32, %arg2: i32) -> (i32, i32) {
    %c0_i32 = arith.constant 0 : i32
    %c0_i32_0 = arith.constant 0 : i32
    %c0_i32_1 = arith.constant 0 : i32
    return %c0_i32, %c0_i32_0 : i32, i32
  }
  func.func @transform_4(%arg0: i32, %arg1: i32, %arg2: i32) -> (i32, i32) {
    %c0_i32 = arith.constant 0 : i32
    %c0_i32_0 = arith.constant 0 : i32
    %c0_i32_1 = arith.constant 0 : i32
    return %c0_i32, %c0_i32_0 : i32, i32
  }
  func.func @transform_5(%arg0: i32, %arg1: i32, %arg2: i32) -> (i32, i32) {
    %c0_i32 = arith.constant 0 : i32
    %c0_i32_0 = arith.constant 0 : i32
    %c0_i32_1 = arith.constant 0 : i32
    return %c0_i32, %c0_i32_0 : i32, i32
  }
  func.func @transform_6(%arg0: i32, %arg1: i32, %arg2: i32) -> (i32, i32) {
    %c0_i32 = arith.constant 0 : i32
    %c0_i32_0 = arith.constant 0 : i32
    %c0_i32_1 = arith.constant 0 : i32
    return %c0_i32, %c0_i32_0 : i32, i32
  }
  func.func @transform_7(%arg0: i32, %arg1: i32, %arg2: i32) -> (i32, i32) {
    %c0_i32 = arith.constant 0 : i32
    %c0_i32_0 = arith.constant 0 : i32
    %c0_i32_1 = arith.constant 0 : i32
    return %c0_i32, %c0_i32_0 : i32, i32
  }
  func.func @transform_8(%arg0: i32, %arg1: i32, %arg2: i32) -> (i32, i32) {
    %c0_i32 = arith.constant 0 : i32
    %c0_i32_0 = arith.constant 0 : i32
    %c0_i32_1 = arith.constant 0 : i32
    return %c0_i32, %c0_i32_0 : i32, i32
  }
  func.func @transform_9(%arg0: i32, %arg1: i32, %arg2: i32) -> (i32, i32) {
    %c0_i32 = arith.constant 0 : i32
    %c0_i32_0 = arith.constant 0 : i32
    %c0_i32_1 = arith.constant 0 : i32
    return %c0_i32, %c0_i32_0 : i32, i32
  }
  func.func @transform_10(%arg0: i32, %arg1: i32, %arg2: i32) -> (i32, i32) {
    %c0_i32 = arith.constant 0 : i32
    %c0_i32_0 = arith.constant 0 : i32
    %c0_i32_1 = arith.constant 0 : i32
    return %c0_i32, %c0_i32_0 : i32, i32
  }
  func.func @transform_11(%arg0: i32, %arg1: i32, %arg2: i32) -> (i32, i32) {
    %c0_i32 = arith.constant 0 : i32
    %c0_i32_0 = arith.constant 0 : i32
    %c0_i32_1 = arith.constant 0 : i32
    return %c0_i32, %c0_i32_0 : i32, i32
  }
  func.func @transform_12(%arg0: i32, %arg1: i32, %arg2: i32) -> (i32, i32) {
    %c0_i32 = arith.constant 0 : i32
    %c0_i32_0 = arith.constant 0 : i32
    %c0_i32_1 = arith.constant 0 : i32
    return %c0_i32, %c0_i32_0 : i32, i32
  }
  func.func @transform_13(%arg0: i32, %arg1: i32, %arg2: i32) -> (i32, i32) {
    %c0_i32 = arith.constant 0 : i32
    %c0_i32_0 = arith.constant 0 : i32
    %c0_i32_1 = arith.constant 0 : i32
    return %c0_i32, %c0_i32_0 : i32, i32
  }
  func.func @transform_14(%arg0: i32, %arg1: i32, %arg2: i32) -> (i32, i32, i32) {
    %0 = arith.muli %arg2, %arg1 : i32
    %c0_i32 = arith.constant 0 : i32
    %c0_i32_0 = arith.constant 0 : i32
    return %arg0, %0, %c0_i32 : i32, i32, i32
  }
}

</mosaic_0001>

<llo_original>
// kernel: tpu_custom_call.1
$region0: #{tpu_custom_call.1}
  #allocation0 [shape = 'u32[]', space=smem, size = 0x4, offset = 0x4, fixed_abs, tag = 'smem constant byte address 0x4 - core index']
  #allocation1 [shape = 'u32[144,128]{1,0:T(1,128)}', space=vmem, size = 0x12000, scoped, tag = 'internal scratch']
  #allocation2 [shape = 'f32[32,32]{1,0:T(8,128)}', space=vmem, size = 0x4000, scoped, tag = 'scratch operand']
  #allocation3 [shape = 'f32[1,32]{1,0:T(1,128)}', space=vmem, size = 0x200, scoped, tag = 'scratch operand']
  #allocation4 [shape = 'f32[32,32]{1,0:T(8,128)}', space=vmem, size = 0x4000, scoped, tag = 'scratch operand']
  #allocation5 [shape = 'f32[1,32]{1,0:T(1,128)}', space=vmem, size = 0x200, scoped, tag = 'scratch operand']
  %s0 = inlined_call_operand.hbm [shape: f32[8,32], index: 0, kind: input, shape index: {}]
  %s1 = inlined_call_operand.vmem [shape: f32[2,16,32], index: 1, kind: input, shape index: {}]
  %s2 = inlined_call_operand.vmem [shape: f32[32,32], index: 2, kind: input, shape index: {}]
  %s3 = inlined_call_operand.vmem [shape: f32[32,32], index: 3, kind: input, shape index: {}]
  %s4 = inlined_call_operand.hbm [shape: f32[32,32], index: 4, kind: input, shape index: {}]
  %s5 = inlined_call_operand.hbm [shape: f32[32,32], index: 5, kind: input, shape index: {}]
  %s6 = inlined_call_operand.hbm [shape: f32[32,32], index: 6, kind: input, shape index: {}]
  %s7 = inlined_call_operand.hbm [shape: f32[32,64], index: 7, kind: input, shape index: {}]
  %s8 = inlined_call_operand.hbm [shape: f32[32,64], index: 8, kind: input, shape index: {}]
  %s9 = inlined_call_operand.vmem [shape: f32[64,32], index: 9, kind: input, shape index: {}]
  %s10 = inlined_call_operand.vmem [shape: f32[1,32], index: 10, kind: input, shape index: {}]
  %s11 = inlined_call_operand.vmem [shape: f32[1,32], index: 11, kind: input, shape index: {}]
  %s12 = inlined_call_operand.vmem [shape: f32[1,32], index: 12, kind: input, shape index: {}]
  %s13 = inlined_call_operand.vmem [shape: f32[1,32], index: 13, kind: input, shape index: {}]
  %s14 = inlined_call_operand.hbm [shape: f32[2,16,32], index: 14, kind: output, shape index: {}]
  %s15 = sld [smem:[#allocation0]]
  $region129: #{tpu_custom_call.1} parent=0
    _
  %s17 = ssub.s32 1, %s15
  %s18 = scalar_select 0, %s17, %s15
  $region1: #{tpu_custom_call.1} parent=0
    #allocation6 [shape = 'u8[4096]{0}', space=vmem, size = 0x1000, scoped, tag = 'input window, operand 0, single buffered']
    #allocation7 [shape = 's32[2]{0}', space=sflag, size = 0x8, scoped, tag = 'scoped memory for tpu_custom_call.1']
    #allocation8 [shape = 's32[2]{0}', space=sflag, size = 0x8, scoped, tag = 'scoped memory for tpu_custom_call.1']
    #allocation9 [shape = 'u8[16384]{0}', space=vmem, size = 0x4000, scoped, tag = 'input window, operand 4, single buffered']
    #allocation10 [shape = 's32[1]{0}', space=sflag, size = 0x4, scoped, tag = 'scoped memory for tpu_custom_call.1']
    #allocation11 [shape = 'u8[16384]{0}', space=vmem, size = 0x4000, scoped, tag = 'input window, operand 5, single buffered']
    #allocation12 [shape = 'u8[16384]{0}', space=vmem, size = 0x4000, scoped, tag = 'input window, operand 6, single buffered']
    #allocation13 [shape = 's32[1]{0}', space=sflag, size = 0x4, scoped, tag = 'scoped memory for tpu_custom_call.1']
    #allocation14 [shape = 'u8[16384]{0}', space=vmem, size = 0x4000, scoped, tag = 'input window, operand 7, single buffered']
    #allocation15 [shape = 'u8[16384]{0}', space=vmem, size = 0x4000, scoped, tag = 'input window, operand 8, single buffered']
    #allocation16 [shape = 's32[1]{0}', space=sflag, size = 0x4, scoped, tag = 'scoped memory for tpu_custom_call.1']
    #allocation17 [shape = 'u8[8192]{0}', space=vmem, size = 0x2000, scoped, tag = 'output window, operand 0']
    %19 = vsyncpa [#allocation7], 0
    %20 = vsyncpa [#allocation10], 0
    %21 = vsyncpa [#allocation13], 0
    %22 = vsyncpa [#allocation16], 0
    %23 = vsyncpa [#allocation8], 0
    %s24 = scalar_lea.sflag [#allocation8], 1
    %25 = vsyncpa %s24, 0
    loop: start=0, step=1, limit=10
    $region2: #{tpu_custom_call.1} parent=1 // loop_pre_header
      _
    $region3: #{tpu_custom_call.1} parent=1 // loop_header
      %s27 = sphi 0, %s31
      %p28 = scmp.ge.s32.totalorder %s27, 10
      %s34 = sphi 0, %s53
      %s35 = sphi 0, %s49
      %s36 = sphi 0, %s45
      %s37 = sphi 0, %s34
      %s38 = sphi 0, %s35
      %s39 = sphi 0, %s36
      %s40 = sphi 0, %s37
      %s41 = sphi 0, %s38
      %s42 = sphi 0, %s39
      %s54 = sphi 0, %s54
      %s56 = sphi 0, %s54
      %s57 = sphi 0, %s56
      %s71 = sphi 0, %s57
      %s79 = sphi 0, %s81
      %s82 = sphi 0, %s79
      %s83 = sphi 0, %s82
      %s99 = sphi 0, %s83
      %s103 = sphi 0, %s103
      %s105 = sphi 0, %s103
      %s106 = sphi 0, %s105
      %s120 = sphi 0, %s106
      %s124 = sphi 0, %s124
      %s126 = sphi 0, %s124
      %s127 = sphi 0, %s126
      %s141 = sphi 0, %s127
      %s145 = sphi 0, %s145
      %s147 = sphi 0, %s145
      %s148 = sphi 0, %s147
      %s162 = sphi 0, %s148
      %s166 = sphi 0, %s166
      %s168 = sphi 0, %s166
      %s169 = sphi 0, %s168
      %s183 = sphi 0, %s169
      %s187 = sphi 0, %s187
      %s189 = sphi 0, %s187
      %s190 = sphi 0, %s189
      %s204 = sphi 0, %s190
      %s208 = sphi 0, %s208
      %s210 = sphi 0, %s208
      %s211 = sphi 0, %s210
      %s225 = sphi 0, %s211
      %s229 = sphi 0, %s229
      %s231 = sphi 0, %s229
      %s232 = sphi 0, %s231
      %s246 = sphi 0, %s232
      %s250 = sphi 0, %s250
      %s252 = sphi 0, %s250
      %s253 = sphi 0, %s252
      %s267 = sphi 0, %s253
      %s271 = sphi 0, %s271
      %s273 = sphi 0, %s271
      %s274 = sphi 0, %s273
      %s288 = sphi 0, %s274
      %s292 = sphi 0, %s292
      %s294 = sphi 0, %s292
      %s295 = sphi 0, %s294
      %s309 = sphi 0, %s295
      %s313 = sphi 0, %s313
      %s315 = sphi 0, %s313
      %s316 = sphi 0, %s315
      %s330 = sphi 0, %s316
      %s334 = sphi 0, %s334
      %s336 = sphi 0, %s334
      %s337 = sphi 0, %s336
      %s351 = sphi 0, %s337
      %s361 = sphi 0, %s363
      %s364 = sphi 0, %s361
      %s365 = sphi 0, %s364
      %s381 = sphi 0, %s365
    $region4: #{tpu_custom_call.1} parent=1 // loop_header_branch
      %30 = sbr.rel (%p28) target = $region8
    $region5: #{tpu_custom_call.1} parent=1 // loop_body
      %s32 = ssub.s32 %s27, 1
      %s33 = ssub.s32 %s27, 2
      %s43 = sadd.s32 1, %s36
      %p44 = scmp.ge.s32.totalorder %s43, 2
      %s45 = scalar_select %p44, 0, %s43
      %s46 = sadd.s32 1, %s35
      %s47 = scalar_select %p44, %s46, %s35
      %p48 = scmp.ge.s32.totalorder %s47, 2
      %s49 = scalar_select %p48, 0, %s47
      %s50 = sadd.s32 1, %s34
      %s51 = scalar_select %p48, %s50, %s34
      %p52 = scmp.ge.s32.totalorder %s51, 2
      %s53 = scalar_select %p52, 0, %s51
      %s55 = sadd.s32 %s54, 1
      %p58 = scmp.eq.s32.totalorder %s27, 7
      %p59 = scmp.ne.s32.totalorder %s54, %s56
      %p60 = scmp.eq.s32.totalorder %s27, 0
      %p61 = por %p59, %p60
      %p62 = scmp.ne.s32.totalorder %s54, %s56
      %p63 = scmp.eq.s32.totalorder %s32, 7
      %p64 = por %p62, %p63
      %p65 = scmp.ne.s32.totalorder %s56, %s57
      %p66 = scmp.eq.s32.totalorder %s32, 0
      %p67 = por %p65, %p66
      %p68 = scmp.ne.s32.totalorder %s56, %s57
      %p69 = scmp.eq.s32.totalorder %s33, 7
      %p70 = por %p68, %p69
      %p72 = scmp.ne.s32.totalorder %s57, %s71
      %p73 = scmp.eq.s32.totalorder %s33, 0
      %p74 = por %p72, %p73
      %s75 = ssub.s32 %s34, %s53
      %s76 = ssub.s32 %s36, %s45
      %s77 = sor.u32 %s75, %s76
      %p78 = scmp.eq.s32.totalorder %s77, 0
      %s80 = sadd.s32 %s79, 1
      %s81 = scalar_select %p78, %s79, %s80
      %p84 = pneg %p78
      %p85 = scmp.eq.s32.totalorder %s27, 7
      %p86 = por %p84, %p85
      %p87 = scmp.ne.s32.totalorder %s79, %s82
      %p88 = scmp.eq.s32.totalorder %s27, 0
      %p89 = por %p87, %p88
      %p90 = scmp.ne.s32.totalorder %s79, %s82
      %p91 = scmp.eq.s32.totalorder %s32, 7
      %p92 = por %p90, %p91
      %p93 = scmp.ne.s32.totalorder %s82, %s83
      %p94 = scmp.eq.s32.totalorder %s32, 0
      %p95 = por %p93, %p94
      %p96 = scmp.ne.s32.totalorder %s82, %s83
      %p97 = scmp.eq.s32.totalorder %s33, 7
      %p98 = por %p96, %p97
      %p100 = scmp.ne.s32.totalorder %s83, %s99
      %p101 = scmp.eq.s32.totalorder %s33, 0
      %p102 = por %p100, %p101
      %s104 = sadd.s32 %s103, 1
      %p107 = scmp.eq.s32.totalorder %s27, 7
      %p108 = scmp.ne.s32.totalorder %s103, %s105
      %p109 = scmp.eq.s32.totalorder %s27, 0
      %p110 = por %p108, %p109
      %p111 = scmp.ne.s32.totalorder %s103, %s105
      %p112 = scmp.eq.s32.totalorder %s32, 7
      %p113 = por %p111, %p112
      %p114 = scmp.ne.s32.totalorder %s105, %s106
      %p115 = scmp.eq.s32.totalorder %s32, 0
      %p116 = por %p114, %p115
      %p117 = scmp.ne.s32.totalorder %s105, %s106
      %p118 = scmp.eq.s32.totalorder %s33, 7
      %p119 = por %p117, %p118
      %p121 = scmp.ne.s32.totalorder %s106, %s120
      %p122 = scmp.eq.s32.totalorder %s33, 0
      %p123 = por %p121, %p122
      %s125 = sadd.s32 %s124, 1
      %p128 = scmp.eq.s32.totalorder %s27, 7
      %p129 = scmp.ne.s32.totalorder %s124, %s126
      %p130 = scmp.eq.s32.totalorder %s27, 0
      %p131 = por %p129, %p130
      %p132 = scmp.ne.s32.totalorder %s124, %s126
      %p133 = scmp.eq.s32.totalorder %s32, 7
      %p134 = por %p132, %p133
      %p135 = scmp.ne.s32.totalorder %s126, %s127
      %p136 = scmp.eq.s32.totalorder %s32, 0
      %p137 = por %p135, %p136
      %p138 = scmp.ne.s32.totalorder %s126, %s127
      %p139 = scmp.eq.s32.totalorder %s33, 7
      %p140 = por %p138, %p139
      %p142 = scmp.ne.s32.totalorder %s127, %s141
      %p143 = scmp.eq.s32.totalorder %s33, 0
      %p144 = por %p142, %p143
      %s146 = sadd.s32 %s145, 1
      %p149 = scmp.eq.s32.totalorder %s27, 7
      %p150 = scmp.ne.s32.totalorder %s145, %s147
      %p151 = scmp.eq.s32.totalorder %s27, 0
      %p152 = por %p150, %p151
      %p153 = scmp.ne.s32.totalorder %s145, %s147
      %p154 = scmp.eq.s32.totalorder %s32, 7
      %p155 = por %p153, %p154
      %p156 = scmp.ne.s32.totalorder %s147, %s148
      %p157 = scmp.eq.s32.totalorder %s32, 0
      %p158 = por %p156, %p157
      %p159 = scmp.ne.s32.totalorder %s147, %s148
      %p160 = scmp.eq.s32.totalorder %s33, 7
      %p161 = por %p159, %p160
      %p163 = scmp.ne.s32.totalorder %s148, %s162
      %p164 = scmp.eq.s32.totalorder %s33, 0
      %p165 = por %p163, %p164
      %s167 = sadd.s32 %s166, 1
      %p170 = scmp.eq.s32.totalorder %s27, 7
      %p171 = scmp.ne.s32.totalorder %s166, %s168
      %p172 = scmp.eq.s32.totalorder %s27, 0
      %p173 = por %p171, %p172
      %p174 = scmp.ne.s32.totalorder %s166, %s168
      %p175 = scmp.eq.s32.totalorder %s32, 7
      %p176 = por %p174, %p175
      %p177 = scmp.ne.s32.totalorder %s168, %s169
      %p178 = scmp.eq.s32.totalorder %s32, 0
      %p179 = por %p177, %p178
      %p180 = scmp.ne.s32.totalorder %s168, %s169
      %p181 = scmp.eq.s32.totalorder %s33, 7
      %p182 = por %p180, %p181
      %p184 = scmp.ne.s32.totalorder %s169, %s183
      %p185 = scmp.eq.s32.totalorder %s33, 0
      %p186 = por %p184, %p185
      %s188 = sadd.s32 %s187, 1
      %p191 = scmp.eq.s32.totalorder %s27, 7
      %p192 = scmp.ne.s32.totalorder %s187, %s189
      %p193 = scmp.eq.s32.totalorder %s27, 0
      %p194 = por %p192, %p193
      %p195 = scmp.ne.s32.totalorder %s187, %s189
      %p196 = scmp.eq.s32.totalorder %s32, 7
      %p197 = por %p195, %p196
      %p198 = scmp.ne.s32.totalorder %s189, %s190
      %p199 = scmp.eq.s32.totalorder %s32, 0
      %p200 = por %p198, %p199
      %p201 = scmp.ne.s32.totalorder %s189, %s190
      %p202 = scmp.eq.s32.totalorder %s33, 7
      %p203 = por %p201, %p202
      %p205 = scmp.ne.s32.totalorder %s190, %s204
      %p206 = scmp.eq.s32.totalorder %s33, 0
      %p207 = por %p205, %p206
      %s209 = sadd.s32 %s208, 1
      %p212 = scmp.eq.s32.totalorder %s27, 7
      %p213 = scmp.ne.s32.totalorder %s208, %s210
      %p214 = scmp.eq.s32.totalorder %s27, 0
      %p215 = por %p213, %p214
      %p216 = scmp.ne.s32.totalorder %s208, %s210
      %p217 = scmp.eq.s32.totalorder %s32, 7
      %p218 = por %p216, %p217
      %p219 = scmp.ne.s32.totalorder %s210, %s211
      %p220 = scmp.eq.s32.totalorder %s32, 0
      %p221 = por %p219, %p220
      %p222 = scmp.ne.s32.totalorder %s210, %s211
      %p223 = scmp.eq.s32.totalorder %s33, 7
      %p224 = por %p222, %p223
      %p226 = scmp.ne.s32.totalorder %s211, %s225
      %p227 = scmp.eq.s32.totalorder %s33, 0
      %p228 = por %p226, %p227
      %s230 = sadd.s32 %s229, 1
      %p233 = scmp.eq.s32.totalorder %s27, 7
      %p234 = scmp.ne.s32.totalorder %s229, %s231
      %p235 = scmp.eq.s32.totalorder %s27, 0
      %p236 = por %p234, %p235
      %p237 = scmp.ne.s32.totalorder %s229, %s231
      %p238 = scmp.eq.s32.totalorder %s32, 7
      %p239 = por %p237, %p238
      %p240 = scmp.ne.s32.totalorder %s231, %s232
      %p241 = scmp.eq.s32.totalorder %s32, 0
      %p242 = por %p240, %p241
      %p243 = scmp.ne.s32.totalorder %s231, %s232
      %p244 = scmp.eq.s32.totalorder %s33, 7
      %p245 = por %p243, %p244
      %p247 = scmp.ne.s32.totalorder %s232, %s246
      %p248 = scmp.eq.s32.totalorder %s33, 0
      %p249 = por %p247, %p248
      %s251 = sadd.s32 %s250, 1
      %p254 = scmp.eq.s32.totalorder %s27, 7
      %p255 = scmp.ne.s32.totalorder %s250, %s252
      %p256 = scmp.eq.s32.totalorder %s27, 0
      %p257 = por %p255, %p256
      %p258 = scmp.ne.s32.totalorder %s250, %s252
      %p259 = scmp.eq.s32.totalorder %s32, 7
      %p260 = por %p258, %p259
      %p261 = scmp.ne.s32.totalorder %s252, %s253
      %p262 = scmp.eq.s32.totalorder %s32, 0
      %p263 = por %p261, %p262
      %p264 = scmp.ne.s32.totalorder %s252, %s253
      %p265 = scmp.eq.s32.totalorder %s33, 7
      %p266 = por %p264, %p265
      %p268 = scmp.ne.s32.totalorder %s253, %s267
      %p269 = scmp.eq.s32.totalorder %s33, 0
      %p270 = por %p268, %p269
      %s272 = sadd.s32 %s271, 1
      %p275 = scmp.eq.s32.totalorder %s27, 7
      %p276 = scmp.ne.s32.totalorder %s271, %s273
      %p277 = scmp.eq.s32.totalorder %s27, 0
      %p278 = por %p276, %p277
      %p279 = scmp.ne.s32.totalorder %s271, %s273
      %p280 = scmp.eq.s32.totalorder %s32, 7
      %p281 = por %p279, %p280
      %p282 = scmp.ne.s32.totalorder %s273, %s274
      %p283 = scmp.eq.s32.totalorder %s32, 0
      %p284 = por %p282, %p283
      %p285 = scmp.ne.s32.totalorder %s273, %s274
      %p286 = scmp.eq.s32.totalorder %s33, 7
      %p287 = por %p285, %p286
      %p289 = scmp.ne.s32.totalorder %s274, %s288
      %p290 = scmp.eq.s32.totalorder %s33, 0
      %p291 = por %p289, %p290
      %s293 = sadd.s32 %s292, 1
      %p296 = scmp.eq.s32.totalorder %s27, 7
      %p297 = scmp.ne.s32.totalorder %s292, %s294
      %p298 = scmp.eq.s32.totalorder %s27, 0
      %p299 = por %p297, %p298
      %p300 = scmp.ne.s32.totalorder %s292, %s294
      %p301 = scmp.eq.s32.totalorder %s32, 7
      %p302 = por %p300, %p301
      %p303 = scmp.ne.s32.totalorder %s294, %s295
      %p304 = scmp.eq.s32.totalorder %s32, 0
      %p305 = por %p303, %p304
      %p306 = scmp.ne.s32.totalorder %s294, %s295
      %p307 = scmp.eq.s32.totalorder %s33, 7
      %p308 = por %p306, %p307
      %p310 = scmp.ne.s32.totalorder %s295, %s309
      %p311 = scmp.eq.s32.totalorder %s33, 0
      %p312 = por %p310, %p311
      %s314 = sadd.s32 %s313, 1
      %p317 = scmp.eq.s32.totalorder %s27, 7
      %p318 = scmp.ne.s32.totalorder %s313, %s315
      %p319 = scmp.eq.s32.totalorder %s27, 0
      %p320 = por %p318, %p319
      %p321 = scmp.ne.s32.totalorder %s313, %s315
      %p322 = scmp.eq.s32.totalorder %s32, 7
      %p323 = por %p321, %p322
      %p324 = scmp.ne.s32.totalorder %s315, %s316
      %p325 = scmp.eq.s32.totalorder %s32, 0
      %p326 = por %p324, %p325
      %p327 = scmp.ne.s32.totalorder %s315, %s316
      %p328 = scmp.eq.s32.totalorder %s33, 7
      %p329 = por %p327, %p328
      %p331 = scmp.ne.s32.totalorder %s316, %s330
      %p332 = scmp.eq.s32.totalorder %s33, 0
      %p333 = por %p331, %p332
      %s335 = sadd.s32 %s334, 1
      %p338 = scmp.eq.s32.totalorder %s27, 7
      %p339 = scmp.ne.s32.totalorder %s334, %s336
      %p340 = scmp.eq.s32.totalorder %s27, 0
      %p341 = por %p339, %p340
      %p342 = scmp.ne.s32.totalorder %s334, %s336
      %p343 = scmp.eq.s32.totalorder %s32, 7
      %p344 = por %p342, %p343
      %p345 = scmp.ne.s32.totalorder %s336, %s337
      %p346 = scmp.eq.s32.totalorder %s32, 0
      %p347 = por %p345, %p346
      %p348 = scmp.ne.s32.totalorder %s336, %s337
      %p349 = scmp.eq.s32.totalorder %s33, 7
      %p350 = por %p348, %p349
      %p352 = scmp.ne.s32.totalorder %s337, %s351
      %p353 = scmp.eq.s32.totalorder %s33, 0
      %p354 = por %p352, %p353
      %s355 = smul.u32 %s36, %s35
      %s356 = smul.u32 %s45, %s49
      %s357 = ssub.s32 %s34, %s53
      %s358 = ssub.s32 %s355, %s356
      %s359 = sor.u32 %s357, %s358
      %p360 = scmp.eq.s32.totalorder %s359, 0
      %s362 = sadd.s32 %s361, 1
      %s363 = scalar_select %p360, %s361, %s362
      %p366 = pneg %p360
      %p367 = scmp.eq.s32.totalorder %s27, 7
      %p368 = por %p366, %p367
      %p369 = scmp.ne.s32.totalorder %s361, %s364
      %p370 = scmp.eq.s32.totalorder %s27, 0
      %p371 = por %p369, %p370
      %p372 = scmp.ne.s32.totalorder %s361, %s364
      %p373 = scmp.eq.s32.totalorder %s32, 7
      %p374 = por %p372, %p373
      %p375 = scmp.ne.s32.totalorder %s364, %s365
      %p376 = scmp.eq.s32.totalorder %s32, 0
      %p377 = por %p375, %p376
      %p378 = scmp.ne.s32.totalorder %s364, %s365
      %p379 = scmp.eq.s32.totalorder %s33, 7
      %p380 = por %p378, %p379
      %p382 = scmp.ne.s32.totalorder %s365, %s381
      %p383 = scmp.eq.s32.totalorder %s33, 0
      %p384 = por %p382, %p383
      %p385 = scmp.le.s32.totalorder 1, %s27
      %p386 = scmp.lt.s32.totalorder %s27, 9
      %p387 = pnand %p385, %p386
      %p388 = pneg %p387
      // Predicated region
      $region9: #{tpu_custom_call.1} parent=5 // pred_check
        _
      $region10: #{tpu_custom_call.1} parent=5 // pred_check_branch
        %390 = sbr.rel (%p387) target = $region12
      $region11: #{tpu_custom_call.1} parent=5 // pred_region
        %s391 = ssub.s32 %s27, 1
        // Predicated region
        $region13: #{tpu_custom_call.1} parent=11 // pred_check
          %p392 = pneg %p67
        $region14: #{tpu_custom_call.1} parent=11 // pred_check_branch
          %394 = sbr.rel (%p392) target = $region16
        $region15: #{tpu_custom_call.1} parent=11 // pred_region
          %s396 = ssub.s32 128, 128
          %397 = vsyncadd [#allocation7], %s396
          %s399 = sshll.u32 [#allocation6], 4
          %s400 = int_to_ptr.vmem [resolvable:$true] %s399
          %402 = dma.hbm_to_vmem [thread:$0]  %s0, 128, %s400, [#allocation7]
        $region16: #{tpu_custom_call.1} parent=11 // pred_fallthru
          _
        // Predicated region
        $region17: #{tpu_custom_call.1} parent=11 // pred_check
          %p403 = pneg %p116
        $region18: #{tpu_custom_call.1} parent=11 // pred_check_branch
          %405 = sbr.rel (%p403) target = $region20
        $region19: #{tpu_custom_call.1} parent=11 // pred_region
          _
        $region20: #{tpu_custom_call.1} parent=11 // pred_fallthru
          _
        // Predicated region
        $region21: #{tpu_custom_call.1} parent=11 // pred_check
          %p406 = pneg %p137
        $region22: #{tpu_custom_call.1} parent=11 // pred_check_branch
          %408 = sbr.rel (%p406) target = $region24
        $region23: #{tpu_custom_call.1} parent=11 // pred_region
          _
        $region24: #{tpu_custom_call.1} parent=11 // pred_fallthru
          _
        // Predicated region
        $region25: #{tpu_custom_call.1} parent=11 // pred_check
          %p409 = pneg %p158
        $region26: #{tpu_custom_call.1} parent=11 // pred_check_branch
          %411 = sbr.rel (%p409) target = $region28
        $region27: #{tpu_custom_call.1} parent=11 // pred_region
          %s413 = ssub.s32 512, 512
          %414 = vsyncadd [#allocation10], %s413
          %s415 = sshll.u32 [#allocation9], 4
          %s416 = int_to_ptr.vmem [resolvable:$true] %s415
          %421 = dma.hbm_to_vmem [thread:$0]  %s4, 512, %s416, [#allocation10], 128, 128, 8
        $region28: #{tpu_custom_call.1} parent=11 // pred_fallthru
          _
        // Predicated region
        $region29: #{tpu_custom_call.1} parent=11 // pred_check
          %p422 = pneg %p179
        $region30: #{tpu_custom_call.1} parent=11 // pred_check_branch
          %424 = sbr.rel (%p422) target = $region32
        $region31: #{tpu_custom_call.1} parent=11 // pred_region
          %s426 = ssub.s32 512, 512
          %427 = vsyncadd [#allocation10], %s426
          %s428 = sshll.u32 [#allocation11], 4
          %s429 = int_to_ptr.vmem [resolvable:$true] %s428
          %434 = dma.hbm_to_vmem [thread:$0]  %s5, 512, %s429, [#allocation10], 128, 128, 8
        $region32: #{tpu_custom_call.1} parent=11 // pred_fallthru
          _
        // Predicated region
        $region33: #{tpu_custom_call.1} parent=11 // pred_check
          %p435 = pneg %p200
        $region34: #{tpu_custom_call.1} parent=11 // pred_check_branch
          %437 = sbr.rel (%p435) target = $region36
        $region35: #{tpu_custom_call.1} parent=11 // pred_region
          %s439 = ssub.s32 512, 512
          %440 = vsyncadd [#allocation13], %s439
          %s441 = sshll.u32 [#allocation12], 4
          %s442 = int_to_ptr.vmem [resolvable:$true] %s441
          %447 = dma.hbm_to_vmem [thread:$0]  %s6, 512, %s442, [#allocation13], 128, 128, 8
        $region36: #{tpu_custom_call.1} parent=11 // pred_fallthru
          _
        // Predicated region
        $region37: #{tpu_custom_call.1} parent=11 // pred_check
          %p448 = pneg %p221
        $region38: #{tpu_custom_call.1} parent=11 // pred_check_branch
          %450 = sbr.rel (%p448) target = $region40
        $region39: #{tpu_custom_call.1} parent=11 // pred_region
          %s452 = ssub.s32 512, 512
          %453 = vsyncadd [#allocation13], %s452
          %s454 = sshll.u32 [#allocation14], 4
          %s455 = int_to_ptr.vmem [resolvable:$true] %s454
          %460 = dma.hbm_to_vmem [thread:$0]  %s7, 512, %s455, [#allocation13], 128, 128, 8
        $region40: #{tpu_custom_call.1} parent=11 // pred_fallthru
          _
        // Predicated region
        $region41: #{tpu_custom_call.1} parent=11 // pred_check
          %p461 = pneg %p242
        $region42: #{tpu_custom_call.1} parent=11 // pred_check_branch
          %463 = sbr.rel (%p461) target = $region44
        $region43: #{tpu_custom_call.1} parent=11 // pred_region
          %s465 = ssub.s32 512, 512
          %466 = vsyncadd [#allocation16], %s465
          %s467 = sshll.u32 [#allocation15], 4
          %s468 = int_to_ptr.vmem [resolvable:$true] %s467
          %473 = dma.hbm_to_vmem [thread:$0]  %s8, 512, %s468, [#allocation16], 128, 128, 8
        $region44: #{tpu_custom_call.1} parent=11 // pred_fallthru
          _
        // Predicated region
        $region45: #{tpu_custom_call.1} parent=11 // pred_check
          %p474 = pneg %p263
        $region46: #{tpu_custom_call.1} parent=11 // pred_check_branch
          %476 = sbr.rel (%p474) target = $region48
        $region47: #{tpu_custom_call.1} parent=11 // pred_region
          _
        $region48: #{tpu_custom_call.1} parent=11 // pred_fallthru
          _
        // Predicated region
        $region49: #{tpu_custom_call.1} parent=11 // pred_check
          %p477 = pneg %p284
        $region50: #{tpu_custom_call.1} parent=11 // pred_check_branch
          %479 = sbr.rel (%p477) target = $region52
        $region51: #{tpu_custom_call.1} parent=11 // pred_region
          _
        $region52: #{tpu_custom_call.1} parent=11 // pred_fallthru
          _
        // Predicated region
        $region53: #{tpu_custom_call.1} parent=11 // pred_check
          %p480 = pneg %p305
        $region54: #{tpu_custom_call.1} parent=11 // pred_check_branch
          %482 = sbr.rel (%p480) target = $region56
        $region55: #{tpu_custom_call.1} parent=11 // pred_region
          _
        $region56: #{tpu_custom_call.1} parent=11 // pred_fallthru
          _
        // Predicated region
        $region57: #{tpu_custom_call.1} parent=11 // pred_check
          %p483 = pneg %p326
        $region58: #{tpu_custom_call.1} parent=11 // pred_check_branch
          %485 = sbr.rel (%p483) target = $region60
        $region59: #{tpu_custom_call.1} parent=11 // pred_region
          _
        $region60: #{tpu_custom_call.1} parent=11 // pred_fallthru
          _
        // Predicated region
        $region61: #{tpu_custom_call.1} parent=11 // pred_check
          %p486 = pneg %p347
        $region62: #{tpu_custom_call.1} parent=11 // pred_check_branch
          %488 = sbr.rel (%p486) target = $region64
        $region63: #{tpu_custom_call.1} parent=11 // pred_region
          _
        $region64: #{tpu_custom_call.1} parent=11 // pred_fallthru
          _
      $region12: #{tpu_custom_call.1} parent=5 // pred_fallthru
        _
      %p489 = scmp.lt.s32.totalorder %s27, 8
      // Predicated region
      $region65: #{tpu_custom_call.1} parent=5 // pred_check
        %p490 = pneg %p489
      $region66: #{tpu_custom_call.1} parent=5 // pred_check_branch
        %492 = sbr.rel (%p490) target = $region68
      $region67: #{tpu_custom_call.1} parent=5 // pred_region
        // Predicated region
        $region69: #{tpu_custom_call.1} parent=67 // pred_check
          %p493 = pneg %p89
        $region70: #{tpu_custom_call.1} parent=67 // pred_check_branch
          %495 = sbr.rel (%p493) target = $region72
        $region71: #{tpu_custom_call.1} parent=67 // pred_region
          %p496 = scmp.lt.s32.totalorder %s34, 1
          %s497 = scalar_select %p496, %s34, 1
          %p498 = scmp.lt.s32.totalorder %s36, 1
          %s499 = scalar_select %p498, %s36, 1
          %s500 = smul.addr %s497, 2
          %s501 = sadd.s32 %s499, %s500
          %s502 = smul.addr %s501, 8
          %s503 = scalar_lea.vmem %s1, %s502
        $region72: #{tpu_custom_call.1} parent=67 // pred_fallthru
          _
      $region68: #{tpu_custom_call.1} parent=5 // pred_fallthru
        _
      %p504 = scmp.le.s32.totalorder 1, %s27
      %p505 = scmp.lt.s32.totalorder %s27, 9
      %p506 = pnand %p504, %p505
      %p507 = pneg %p506
      // Predicated region
      $region73: #{tpu_custom_call.1} parent=5 // pred_check
        _
      $region74: #{tpu_custom_call.1} parent=5 // pred_check_branch
        %509 = sbr.rel (%p506) target = $region76
      $region75: #{tpu_custom_call.1} parent=5 // pred_region
        %s510 = ssub.s32 %s27, 1
        // Predicated region
        $region77: #{tpu_custom_call.1} parent=75 // pred_check
          %p511 = pneg %p67
        $region78: #{tpu_custom_call.1} parent=75 // pred_check_branch
          %513 = sbr.rel (%p511) target = $region80
        $region79: #{tpu_custom_call.1} parent=75 // pred_region
          %514 = dma.done [#allocation7], 128
        $region80: #{tpu_custom_call.1} parent=75 // pred_fallthru
          _
        // Predicated region
        $region81: #{tpu_custom_call.1} parent=75 // pred_check
          %p515 = pneg %p158
        $region82: #{tpu_custom_call.1} parent=75 // pred_check_branch
          %517 = sbr.rel (%p515) target = $region84
        $region83: #{tpu_custom_call.1} parent=75 // pred_region
          %518 = dma.done [#allocation10], 512
        $region84: #{tpu_custom_call.1} parent=75 // pred_fallthru
          _
        // Predicated region
        $region85: #{tpu_custom_call.1} parent=75 // pred_check
          %p519 = pneg %p179
        $region86: #{tpu_custom_call.1} parent=75 // pred_check_branch
          %521 = sbr.rel (%p519) target = $region88
        $region87: #{tpu_custom_call.1} parent=75 // pred_region
          %522 = dma.done [#allocation10], 512
        $region88: #{tpu_custom_call.1} parent=75 // pred_fallthru
          _
        // Predicated region
        $region89: #{tpu_custom_call.1} parent=75 // pred_check
          %p523 = pneg %p200
        $region90: #{tpu_custom_call.1} parent=75 // pred_check_branch
          %525 = sbr.rel (%p523) target = $region92
        $region91: #{tpu_custom_call.1} parent=75 // pred_region
          %526 = dma.done [#allocation13], 512
        $region92: #{tpu_custom_call.1} parent=75 // pred_fallthru
          _
        // Predicated region
        $region93: #{tpu_custom_call.1} parent=75 // pred_check
          %p527 = pneg %p221
        $region94: #{tpu_custom_call.1} parent=75 // pred_check_branch
          %529 = sbr.rel (%p527) target = $region96
        $region95: #{tpu_custom_call.1} parent=75 // pred_region
          %530 = dma.done [#allocation13], 512
        $region96: #{tpu_custom_call.1} parent=75 // pred_fallthru
          _
        // Predicated region
        $region97: #{tpu_custom_call.1} parent=75 // pred_check
          %p531 = pneg %p242
        $region98: #{tpu_custom_call.1} parent=75 // pred_check_branch
          %533 = sbr.rel (%p531) target = $region100
        $region99: #{tpu_custom_call.1} parent=75 // pred_region
          %534 = dma.done [#allocation16], 512
        $region100: #{tpu_custom_call.1} parent=75 // pred_fallthru
          _
        %p535 = pneg %p67
        %p536 = pneg %p64
        %p537 = scmp.lt.s32.totalorder %s37, 1
        %s538 = scalar_select %p537, %s37, 1
        %p539 = scmp.lt.s32.totalorder %s39, 1
        %s540 = scalar_select %p539, %s39, 1
        %s541 = smul.addr %s538, 2
        %s542 = sadd.s32 %s540, %s541
        %s543 = smul.addr %s542, 8
        %s544 = scalar_lea.vmem %s1, %s543
        %p545 = pneg %p95
        %p546 = pneg %p92
        %p547 = pneg %p116
        %p548 = pneg %p113
        %p549 = pneg %p137
        %p550 = pneg %p134
        %p551 = pneg %p158
        %p552 = pneg %p155
        %p553 = pneg %p179
        %p554 = pneg %p176
        %p555 = pneg %p200
        %p556 = pneg %p197
        %p557 = pneg %p221
        %p558 = pneg %p218
        %p559 = pneg %p242
        %p560 = pneg %p239
        %p561 = pneg %p263
        %p562 = pneg %p260
        %p563 = pneg %p284
        %p564 = pneg %p281
        %p565 = pneg %p305
        %p566 = pneg %p302
        %p567 = pneg %p326
        %p568 = pneg %p323
        %p569 = pneg %p347
        %p570 = pneg %p344
        %p571 = pneg %p377
        %p572 = pneg %p374
        %s573 = sand.u32 %s364, 1
        %s574 = scalar_lea.sflag [#allocation8], %s573
        %s575 = sand.u32 %s364, 1
        %s576 = smul.addr %s575, 8
        %s577 = scalar_lea.vmem [#allocation17], %s576
        %p578 = scmp.lt.s32.totalorder %s37, 1
        %s579 = scalar_select %p578, %s37, 1
        %p580 = scmp.lt.s32.totalorder %s39, 1
        %s581 = scalar_select %p580, %s39, 1
        %s582 = smul.addr %s579, 2
        %s583 = sadd.s32 %s581, %s582
        %s584 = smul.addr %s583, 8
        %s585 = scalar_lea.vmem %s1, %s584
        %s586 = smul.u32 %s39, %s38
        %v587 = vld [vmem:[%s585] sm:$0xff]
        %p588 = scmp.eq.s32.totalorder %s38, 0
        %p589 = scmp.eq.s32.totalorder %s39, 0
        %p590 = pnand %p588, %p589
        %p591 = pneg %p590
        // Predicated region
        $region101: #{tpu_custom_call.1} parent=75 // pred_check
          _
        $region102: #{tpu_custom_call.1} parent=75 // pred_check_branch
          %593 = sbr.rel (%p590) target = $region104
        $region103: #{tpu_custom_call.1} parent=75 // pred_region
          %vm594 = vcmask 261120
          %595 = vst.msk [vmem:[#allocation2] sm:$0xff] %vm594, 0.0
          %596 = vst.msk [vmem:[#allocation2 + $0x8] sm:$0xff] %vm594, 0.0
          %597 = vst.msk [vmem:[#allocation2 + $0x10] sm:$0xff] %vm594, 0.0
          %598 = vst.msk [vmem:[#allocation2 + $0x18] sm:$0xff] %vm594, 0.0
          %vm599 = vcmask 253952
          %600 = vst.msk [vmem:[#allocation3] sm:$0x1] %vm599, 0.0
        $region104: #{tpu_custom_call.1} parent=75 // pred_fallthru
          _
        // Predicated region
        $region105: #{tpu_custom_call.1} parent=75 // pred_check
          %p601 = pneg %p588
        $region106: #{tpu_custom_call.1} parent=75 // pred_check_branch
          %603 = sbr.rel (%p601) target = $region108
        $region107: #{tpu_custom_call.1} parent=75 // pred_region
          %v604 = vld [vmem:[#allocation9] sm:$0xff]
          %v605 = vld [vmem:[#allocation9 + $0x8] sm:$0xff]
          %v606 = vld [vmem:[#allocation9 + $0x10] sm:$0xff]
          %v607 = vld [vmem:[#allocation9 + $0x18] sm:$0xff]
          %vm608 = vcmask 261120
          %v610 = vsel %vm608, %v587, 0
          %612 = vmatprep.subr.mxu0 0.0
          %613 = vmatpush1.msra.mxu0 0.0
          %614 = vmatprep.subr.mxu0 0.0
          %615 = vmatpush1.msra.mxu0 0.0
          %616 = vmatprep.subr.mxu0 0.0
          %617 = vmatpush1.msra.mxu0 0.0
          %618 = vmatprep.subr.mxu0 0.0
          %619 = vmatpush1.msra.mxu0 0.0
          %620 = vmatprep.subr.mxu0 0.0
          %621 = vmatpush1.msra.mxu0 0.0
          %622 = vmatprep.subr.mxu0 0.0
          %623 = vmatpush1.msra.mxu0 0.0
          %624 = vmatprep.subr.mxu0 0.0
          %625 = vmatpush1.msra.mxu0 0.0
          %626 = vmatprep.subr.mxu0 0.0
          %627 = vmatpush1.msra.mxu0 0.0
          %628 = vmatprep.subr.mxu0 0.0
          %629 = vmatpush1.msra.mxu0 0.0
          %630 = vmatprep.subr.mxu0 0.0
          %631 = vmatpush1.msra.mxu0 0.0
          %632 = vmatprep.subr.mxu0 0.0
          %633 = vmatpush1.msra.mxu0 0.0
          %634 = vmatprep.subr.mxu0 0.0
          %635 = vmatpush1.msra.mxu0 0.0
          %636 = vmatprep.subr.mxu0 0.0
          %637 = vmatpush1.msra.mxu0 %v607
          %638 = vmatprep.subr.mxu0 0.0
          %639 = vmatpush1.msra.mxu0 %v606
          %640 = vmatprep.subr.mxu0 0.0
          %641 = vmatpush1.msra.mxu0 %v605
          %642 = vmatprep.subr.mxu0 0.0
          %643 = vmatpush1.msra.mxu0 %v604
          %644 = vmatprep.subr.mxu0 0.0
          %645 = vmatpush2.msra.mxu0 0.0
          %646 = vmatprep.subr.mxu0 0.0
          %647 = vmatpush2.msra.mxu0 0.0
          %648 = vmatprep.subr.mxu0 0.0
          %649 = vmatpush2.msra.mxu0 0.0
          %650 = vmatprep.subr.mxu0 0.0
          %651 = vmatpush2.msra.mxu0 0.0
          %652 = vmatprep.subr.mxu0 0.0
          %653 = vmatpush2.msra.mxu0 0.0
          %654 = vmatprep.subr.mxu0 0.0
          %655 = vmatpush2.msra.mxu0 0.0
          %656 = vmatprep.subr.mxu0 0.0
          %657 = vmatpush2.msra.mxu0 0.0
          %658 = vmatprep.subr.mxu0 0.0
          %659 = vmatpush2.msra.mxu0 0.0
          %660 = vmatprep.subr.mxu0 0.0
          %661 = vmatpush2.msra.mxu0 0.0
          %662 = vmatprep.subr.mxu0 0.0
          %663 = vmatpush2.msra.mxu0 0.0
          %664 = vmatprep.subr.mxu0 0.0
          %665 = vmatpush2.msra.mxu0 0.0
          %666 = vmatprep.subr.mxu0 0.0
          %667 = vmatpush2.msra.mxu0 0.0
          %668 = vmatprep.subr.mxu0 0.0
          %669 = vmatpush2.msra.mxu0 0.0
          %670 = vmatprep.subr.mxu0 0.0
          %671 = vmatpush2.msra.mxu0 0.0
          %672 = vmatprep.subr.mxu0 0.0
          %673 = vmatpush2.msra.mxu0 0.0
          %674 = vmatprep.subr.mxu0 0.0
          %675 = vmatpush2.msra.mxu0 0.0
          %676 = vmatprep.mubr.f32.mxu0 0.0
          %677 = vmatmul.mubr.f32.gmra.mxu0 %v610
          %v678 = vpop.f32.mrf.mxu0
          %v679 = vadd.f32 0.0, %v678
          %v680 = vpop.f32.mrf.mxu0
          %681 = vdwg.mxu0
          %vm682 = vcmp.gt.f32.partialorder %v679, 0.0
          %v683 = vadd.f32 %v679, 1.0
          %v684 = vmul.f32 %v679, 1.442695
          %v685 = vpow.pop %v684
          %v686 = vsel %vm682, %v683, %v685
          %v687 = vld [vmem:[#allocation11] sm:$0xff]
          %v688 = vld [vmem:[#allocation11 + $0x8] sm:$0xff]
          %v689 = vld [vmem:[#allocation11 + $0x10] sm:$0xff]
          %v690 = vld [vmem:[#allocation11 + $0x18] sm:$0xff]
          %691 = vmatprep.subr.mxu0 0.0
          %692 = vmatpush1.msra.mxu0 0.0
          %693 = vmatprep.subr.mxu0 0.0
          %694 = vmatpush1.msra.mxu0 0.0
          %695 = vmatprep.subr.mxu0 0.0
          %696 = vmatpush1.msra.mxu0 0.0
          %697 = vmatprep.subr.mxu0 0.0
          %698 = vmatpush1.msra.mxu0 0.0
          %699 = vmatprep.subr.mxu0 0.0
          %700 = vmatpush1.msra.mxu0 0.0
          %701 = vmatprep.subr.mxu0 0.0
          %702 = vmatpush1.msra.mxu0 0.0
          %703 = vmatprep.subr.mxu0 0.0
          %704 = vmatpush1.msra.mxu0 0.0
          %705 = vmatprep.subr.mxu0 0.0
          %706 = vmatpush1.msra.mxu0 0.0
          %707 = vmatprep.subr.mxu0 0.0
          %708 = vmatpush1.msra.mxu0 0.0
          %709 = vmatprep.subr.mxu0 0.0
          %710 = vmatpush1.msra.mxu0 0.0
          %711 = vmatprep.subr.mxu0 0.0
          %712 = vmatpush1.msra.mxu0 0.0
          %713 = vmatprep.subr.mxu0 0.0
          %714 = vmatpush1.msra.mxu0 0.0
          %715 = vmatprep.subr.mxu0 0.0
          %716 = vmatpush1.msra.mxu0 %v690
          %717 = vmatprep.subr.mxu0 0.0
          %718 = vmatpush1.msra.mxu0 %v689
          %719 = vmatprep.subr.mxu0 0.0
          %720 = vmatpush1.msra.mxu0 %v688
          %721 = vmatprep.subr.mxu0 0.0
          %722 = vmatpush1.msra.mxu0 %v687
          %723 = vmatprep.subr.mxu0 0.0
          %724 = vmatpush2.msra.mxu0 0.0
          %725 = vmatprep.subr.mxu0 0.0
          %726 = vmatpush2.msra.mxu0 0.0
          %727 = vmatprep.subr.mxu0 0.0
          %728 = vmatpush2.msra.mxu0 0.0
          %729 = vmatprep.subr.mxu0 0.0
          %730 = vmatpush2.msra.mxu0 0.0
          %731 = vmatprep.subr.mxu0 0.0
          %732 = vmatpush2.msra.mxu0 0.0
          %733 = vmatprep.subr.mxu0 0.0
          %734 = vmatpush2.msra.mxu0 0.0
          %735 = vmatprep.subr.mxu0 0.0
          %736 = vmatpush2.msra.mxu0 0.0
          %737 = vmatprep.subr.mxu0 0.0
          %738 = vmatpush2.msra.mxu0 0.0
          %739 = vmatprep.subr.mxu0 0.0
          %740 = vmatpush2.msra.mxu0 0.0
          %741 = vmatprep.subr.mxu0 0.0
          %742 = vmatpush2.msra.mxu0 0.0
          %743 = vmatprep.subr.mxu0 0.0
          %744 = vmatpush2.msra.mxu0 0.0
          %745 = vmatprep.subr.mxu0 0.0
          %746 = vmatpush2.msra.mxu0 0.0
          %747 = vmatprep.subr.mxu0 0.0
          %748 = vmatpush2.msra.mxu0 0.0
          %749 = vmatprep.subr.mxu0 0.0
          %750 = vmatpush2.msra.mxu0 0.0
          %751 = vmatprep.subr.mxu0 0.0
          %752 = vmatpush2.msra.mxu0 0.0
          %753 = vmatprep.subr.mxu0 0.0
          %754 = vmatpush2.msra.mxu0 0.0
          %755 = vmatprep.mubr.f32.mxu0 0.0
          %756 = vmatmul.mubr.f32.gmra.mxu0 %v610
          %v757 = vpop.f32.mrf.mxu0
          %v758 = vadd.f32 0.0, %v757
          %v759 = vpop.f32.mrf.mxu0
          %760 = vdwg.mxu0
          %v761 = vld [vmem:[#allocation3] sm:$0x1]
          %v762 = vsel %vm608, %v686, 0.0
          %v763 = vrot.slane %v762, 4
          %v764 = vadd.f32 %v762, %v763
          %v765 = vrot.slane %v764, 2
          %v766 = vadd.f32 %v764, %v765
          %v767 = vrot.slane %v766, 1
          %v768 = vadd.f32 %v766, %v767
          %v769 = vadd.f32 %v761, %v768
          %vm770 = vcmask 253952
          %771 = vst.msk [vmem:[#allocation3] sm:$0x1] %vm770, %v769
          %v772 = vld [vmem:[#allocation2] sm:$0xff]
          %v773 = vld [vmem:[#allocation2 + $0x8] sm:$0xff]
          %v774 = vld [vmem:[#allocation2 + $0x10] sm:$0xff]
          %v775 = vld [vmem:[#allocation2 + $0x18] sm:$0xff]
          %776 = vxpose.xlu0.b32.start [1/16] %v686, 128
          %777 = vxpose.xlu0.b32.cont [2/16] 0.0, 128
          %778 = vxpose.xlu0.b32.cont [3/16] 0.0, 128
          %779 = vxpose.xlu0.b32.cont [4/16] 0.0, 128
          %780 = vxpose.xlu0.b32.cont [5/16] 0.0, 128
          %781 = vxpose.xlu0.b32.cont [6/16] 0.0, 128
          %782 = vxpose.xlu0.b32.cont [7/16] 0.0, 128
          %783 = vxpose.xlu0.b32.cont [8/16] 0.0, 128
          %784 = vxpose.xlu0.b32.cont [9/16] 0.0, 128
          %785 = vxpose.xlu0.b32.cont [10/16] 0.0, 128
          %786 = vxpose.xlu0.b32.cont [11/16] 0.0, 128
          %787 = vxpose.xlu0.b32.cont [12/16] 0.0, 128
          %788 = vxpose.xlu0.b32.cont [13/16] 0.0, 128
          %789 = vxpose.xlu0.b32.cont [14/16] 0.0, 128
          %790 = vxpose.xlu0.b32.cont [15/16] 0.0, 128
          %791 = vxpose.xlu0.b32.end [16/16] 0.0, 128
          %v792 = vpop.trf.xlu0
          %v793 = vpop.trf.xlu0
          %v794 = vpop.trf.xlu0
          %v795 = vpop.trf.xlu0
          %v796 = vpop.trf.xlu0
          %v797 = vpop.trf.xlu0
          %v798 = vpop.trf.xlu0
          %v799 = vpop.trf.xlu0
          %v800 = vpop.trf.xlu0
          %v801 = vpop.trf.xlu0
          %v802 = vpop.trf.xlu0
          %v803 = vpop.trf.xlu0
          %v804 = vpop.trf.xlu0
          %v805 = vpop.trf.xlu0
          %v806 = vpop.trf.xlu0
          %v807 = vpop.trf.xlu0
          %vm808 = vcmask 64512
          %v810 = vsel %vm808, %v792, 0
          %v813 = vsel %vm808, %v793, 0
          %v816 = vsel %vm808, %v794, 0
          %v819 = vsel %vm808, %v795, 0
          %821 = vmatprep.subr.mxu0 0.0
          %822 = vmatpush1.msra.mxu0 0.0
          %823 = vmatprep.subr.mxu0 0.0
          %824 = vmatpush1.msra.mxu0 0.0
          %825 = vmatprep.subr.mxu0 0.0
          %826 = vmatpush1.msra.mxu0 0.0
          %827 = vmatprep.subr.mxu0 0.0
          %828 = vmatpush1.msra.mxu0 0.0
          %829 = vmatprep.subr.mxu0 0.0
          %830 = vmatpush1.msra.mxu0 0.0
          %831 = vmatprep.subr.mxu0 0.0
          %832 = vmatpush1.msra.mxu0 0.0
          %833 = vmatprep.subr.mxu0 0.0
          %834 = vmatpush1.msra.mxu0 0.0
          %835 = vmatprep.subr.mxu0 0.0
          %836 = vmatpush1.msra.mxu0 0.0
          %837 = vmatprep.subr.mxu0 0.0
          %838 = vmatpush1.msra.mxu0 0.0
          %839 = vmatprep.subr.mxu0 0.0
          %840 = vmatpush1.msra.mxu0 0.0
          %841 = vmatprep.subr.mxu0 0.0
          %842 = vmatpush1.msra.mxu0 0.0
          %843 = vmatprep.subr.mxu0 0.0
          %844 = vmatpush1.msra.mxu0 0.0
          %845 = vmatprep.subr.mxu0 0.0
          %846 = vmatpush1.msra.mxu0 0.0
          %847 = vmatprep.subr.mxu0 0.0
          %848 = vmatpush1.msra.mxu0 0.0
          %849 = vmatprep.subr.mxu0 0.0
          %850 = vmatpush1.msra.mxu0 0.0
          %851 = vmatprep.subr.mxu0 0.0
          %852 = vmatpush1.msra.mxu0 %v758
          %853 = vmatprep.subr.mxu0 0.0
          %854 = vmatpush2.msra.mxu0 0.0
          %855 = vmatprep.subr.mxu0 0.0
          %856 = vmatpush2.msra.mxu0 0.0
          %857 = vmatprep.subr.mxu0 0.0
          %858 = vmatpush2.msra.mxu0 0.0
          %859 = vmatprep.subr.mxu0 0.0
          %860 = vmatpush2.msra.mxu0 0.0
          %861 = vmatprep.subr.mxu0 0.0
          %862 = vmatpush2.msra.mxu0 0.0
          %863 = vmatprep.subr.mxu0 0.0
          %864 = vmatpush2.msra.mxu0 0.0
          %865 = vmatprep.subr.mxu0 0.0
          %866 = vmatpush2.msra.mxu0 0.0
          %867 = vmatprep.subr.mxu0 0.0
          %868 = vmatpush2.msra.mxu0 0.0
          %869 = vmatprep.subr.mxu0 0.0
          %870 = vmatpush2.msra.mxu0 0.0
          %871 = vmatprep.subr.mxu0 0.0
          %872 = vmatpush2.msra.mxu0 0.0
          %873 = vmatprep.subr.mxu0 0.0
          %874 = vmatpush2.msra.mxu0 0.0
          %875 = vmatprep.subr.mxu0 0.0
          %876 = vmatpush2.msra.mxu0 0.0
          %877 = vmatprep.subr.mxu0 0.0
          %878 = vmatpush2.msra.mxu0 0.0
          %879 = vmatprep.subr.mxu0 0.0
          %880 = vmatpush2.msra.mxu0 0.0
          %881 = vmatprep.subr.mxu0 0.0
          %882 = vmatpush2.msra.mxu0 0.0
          %883 = vmatprep.subr.mxu0 0.0
          %884 = vmatpush2.msra.mxu0 0.0
          %885 = vmatprep.mubr.f32.mxu0 0.0
          %886 = vmatmul.mubr.f32.gmra.mxu0 %v810
          %v887 = vpop.f32.mrf.mxu0
          %v888 = vadd.f32 0.0, %v887
          %v889 = vpop.f32.mrf.mxu0
          %890 = vmatprep.mubr.f32.mxu0 0.0
          %891 = vmatmul.mubr.f32.gmra.mxu0 %v813
          %v892 = vpop.f32.mrf.mxu0
          %v893 = vadd.f32 0.0, %v892
          %v894 = vpop.f32.mrf.mxu0
          %895 = vmatprep.mubr.f32.mxu0 0.0
          %896 = vmatmul.mubr.f32.gmra.mxu0 %v816
          %v897 = vpop.f32.mrf.mxu0
          %v898 = vadd.f32 0.0, %v897
          %v899 = vpop.f32.mrf.mxu0
          %900 = vmatprep.mubr.f32.mxu0 0.0
          %901 = vmatmul.mubr.f32.gmra.mxu0 %v819
          %v902 = vpop.f32.mrf.mxu0
          %v903 = vadd.f32 0.0, %v902
          %v904 = vpop.f32.mrf.mxu0
          %905 = vdwg.mxu0
          %v906 = vadd.f32 %v772, %v888
          %v907 = vadd.f32 %v773, %v893
          %v908 = vadd.f32 %v774, %v898
          %v909 = vadd.f32 %v775, %v903
          %910 = vst.msk [vmem:[#allocation2] sm:$0xff] %vm608, %v906
          %911 = vst.msk [vmem:[#allocation2 + $0x8] sm:$0xff] %vm608, %v907
          %912 = vst.msk [vmem:[#allocation2 + $0x10] sm:$0xff] %vm608, %v908
          %913 = vst.msk [vmem:[#allocation2 + $0x18] sm:$0xff] %vm608, %v909
        $region108: #{tpu_custom_call.1} parent=75 // pred_fallthru
          _
        %p914 = scmp.eq.s32.totalorder %s38, 1
        %p915 = pnand %p914, %p589
        %p916 = pneg %p915
        // Predicated region
        $region109: #{tpu_custom_call.1} parent=75 // pred_check
          _
        $region110: #{tpu_custom_call.1} parent=75 // pred_check_branch
          %918 = sbr.rel (%p915) target = $region112
        $region111: #{tpu_custom_call.1} parent=75 // pred_region
          %v919 = vld [vmem:[#allocation6] sm:$0xff]
          %v920 = vld [vmem:[%s2] sm:$0xff]
          %v921 = vld [vmem:[%s2 + $0x8] sm:$0xff]
          %v922 = vld [vmem:[%s2 + $0x10] sm:$0xff]
          %v923 = vld [vmem:[%s2 + $0x18] sm:$0xff]
          %v924 = vld [vmem:[%s3] sm:$0xff]
          %v925 = vld [vmem:[%s3 + $0x8] sm:$0xff]
          %v926 = vld [vmem:[%s3 + $0x10] sm:$0xff]
          %v927 = vld [vmem:[%s3 + $0x18] sm:$0xff]
          %vm928 = vcmask 261120
          %v930 = vsel %vm928, %v919, 0
          %932 = vmatprep.subr.mxu0 0.0
          %933 = vmatpush1.msra.mxu0 0.0
          %934 = vmatprep.subr.mxu0 0.0
          %935 = vmatpush1.msra.mxu0 0.0
          %936 = vmatprep.subr.mxu0 0.0
          %937 = vmatpush1.msra.mxu0 0.0
          %938 = vmatprep.subr.mxu0 0.0
          %939 = vmatpush1.msra.mxu0 0.0
          %940 = vmatprep.subr.mxu0 0.0
          %941 = vmatpush1.msra.mxu0 0.0
          %942 = vmatprep.subr.mxu0 0.0
          %943 = vmatpush1.msra.mxu0 0.0
          %944 = vmatprep.subr.mxu0 0.0
          %945 = vmatpush1.msra.mxu0 0.0
          %946 = vmatprep.subr.mxu0 0.0
          %947 = vmatpush1.msra.mxu0 0.0
          %948 = vmatprep.subr.mxu0 0.0
          %949 = vmatpush1.msra.mxu0 0.0
          %950 = vmatprep.subr.mxu0 0.0
          %951 = vmatpush1.msra.mxu0 0.0
          %952 = vmatprep.subr.mxu0 0.0
          %953 = vmatpush1.msra.mxu0 0.0
          %954 = vmatprep.subr.mxu0 0.0
          %955 = vmatpush1.msra.mxu0 0.0
          %956 = vmatprep.subr.mxu0 0.0
          %957 = vmatpush1.msra.mxu0 %v927
          %958 = vmatprep.subr.mxu0 0.0
          %959 = vmatpush1.msra.mxu0 %v926
          %960 = vmatprep.subr.mxu0 0.0
          %961 = vmatpush1.msra.mxu0 %v925
          %962 = vmatprep.subr.mxu0 0.0
          %963 = vmatpush1.msra.mxu0 %v924
          %964 = vmatprep.subr.mxu0 0.0
          %965 = vmatpush2.msra.mxu0 0.0
          %966 = vmatprep.subr.mxu0 0.0
          %967 = vmatpush2.msra.mxu0 0.0
          %968 = vmatprep.subr.mxu0 0.0
          %969 = vmatpush2.msra.mxu0 0.0
          %970 = vmatprep.subr.mxu0 0.0
          %971 = vmatpush2.msra.mxu0 0.0
          %972 = vmatprep.subr.mxu0 0.0
          %973 = vmatpush2.msra.mxu0 0.0
          %974 = vmatprep.subr.mxu0 0.0
          %975 = vmatpush2.msra.mxu0 0.0
          %976 = vmatprep.subr.mxu0 0.0
          %977 = vmatpush2.msra.mxu0 0.0
          %978 = vmatprep.subr.mxu0 0.0
          %979 = vmatpush2.msra.mxu0 0.0
          %980 = vmatprep.subr.mxu0 0.0
          %981 = vmatpush2.msra.mxu0 0.0
          %982 = vmatprep.subr.mxu0 0.0
          %983 = vmatpush2.msra.mxu0 0.0
          %984 = vmatprep.subr.mxu0 0.0
          %985 = vmatpush2.msra.mxu0 0.0
          %986 = vmatprep.subr.mxu0 0.0
          %987 = vmatpush2.msra.mxu0 0.0
          %988 = vmatprep.subr.mxu0 0.0
          %989 = vmatpush2.msra.mxu0 0.0
          %990 = vmatprep.subr.mxu0 0.0
          %991 = vmatpush2.msra.mxu0 0.0
          %992 = vmatprep.subr.mxu0 0.0
          %993 = vmatpush2.msra.mxu0 0.0
          %994 = vmatprep.subr.mxu0 0.0
          %995 = vmatpush2.msra.mxu0 0.0
          %996 = vmatprep.mubr.f32.mxu0 0.0
          %997 = vmatmul.mubr.f32.gmra.mxu0 %v930
          %v998 = vpop.f32.mrf.mxu0
          %v999 = vadd.f32 0.0, %v998
          %v1000 = vpop.f32.mrf.mxu0
          %1001 = vdwg.mxu0
          %vm1002 = vcmp.gt.f32.partialorder %v999, 0.0
          %v1003 = vadd.f32 %v999, 1.0
          %v1004 = vmul.f32 %v999, 1.442695
          %v1005 = vpow.pop %v1004
          %v1006 = vsel %vm1002, %v1003, %v1005
          %v1007 = vld [vmem:[#allocation2] sm:$0xff]
          %v1008 = vld [vmem:[#allocation2 + $0x8] sm:$0xff]
          %v1009 = vld [vmem:[#allocation2 + $0x10] sm:$0xff]
          %v1010 = vld [vmem:[#allocation2 + $0x18] sm:$0xff]
          %v1011 = vmul.f32 %v1007, %v920
          %v1012 = vmul.f32 %v1008, %v921
          %v1013 = vmul.f32 %v1009, %v922
          %v1014 = vmul.f32 %v1010, %v923
          %v1015 = vld [vmem:[#allocation3] sm:$0x1]
          %v1017 = vlaneseq
          %v1018 = vshrl.u32 %v1017, 7
          %v1019 = vsub.s32 0, %v1018
          %v1020 = vrot.slane %v1015, %v1019
          %v1022 = vmul.f32 %v1006, %v1020
          %v1024 = vsel %vm928, %v1022, 0
          %1026 = vmatprep.subr.mxu0 0.0
          %1027 = vmatpush1.msra.mxu0 0.0
          %1028 = vmatprep.subr.mxu0 0.0
          %1029 = vmatpush1.msra.mxu0 0.0
          %1030 = vmatprep.subr.mxu0 0.0
          %1031 = vmatpush1.msra.mxu0 0.0
          %1032 = vmatprep.subr.mxu0 0.0
          %1033 = vmatpush1.msra.mxu0 0.0
          %1034 = vmatprep.subr.mxu0 0.0
          %1035 = vmatpush1.msra.mxu0 0.0
          %1036 = vmatprep.subr.mxu0 0.0
          %1037 = vmatpush1.msra.mxu0 0.0
          %1038 = vmatprep.subr.mxu0 0.0
          %1039 = vmatpush1.msra.mxu0 0.0
          %1040 = vmatprep.subr.mxu0 0.0
          %1041 = vmatpush1.msra.mxu0 0.0
          %1042 = vmatprep.subr.mxu0 0.0
          %1043 = vmatpush1.msra.mxu0 0.0
          %1044 = vmatprep.subr.mxu0 0.0
          %1045 = vmatpush1.msra.mxu0 0.0
          %1046 = vmatprep.subr.mxu0 0.0
          %1047 = vmatpush1.msra.mxu0 0.0
          %1048 = vmatprep.subr.mxu0 0.0
          %1049 = vmatpush1.msra.mxu0 0.0
          %1050 = vmatprep.subr.mxu0 0.0
          %1051 = vmatpush1.msra.mxu0 %v923
          %1052 = vmatprep.subr.mxu0 0.0
          %1053 = vmatpush1.msra.mxu0 %v922
          %1054 = vmatprep.subr.mxu0 0.0
          %1055 = vmatpush1.msra.mxu0 %v921
          %1056 = vmatprep.subr.mxu0 0.0
          %1057 = vmatpush1.msra.mxu0 %v920
          %1058 = vmatprep.subr.mxu0 0.0
          %1059 = vmatpush2.msra.mxu0 0.0
          %1060 = vmatprep.subr.mxu0 0.0
          %1061 = vmatpush2.msra.mxu0 0.0
          %1062 = vmatprep.subr.mxu0 0.0
          %1063 = vmatpush2.msra.mxu0 0.0
          %1064 = vmatprep.subr.mxu0 0.0
          %1065 = vmatpush2.msra.mxu0 0.0
          %1066 = vmatprep.subr.mxu0 0.0
          %1067 = vmatpush2.msra.mxu0 0.0
          %1068 = vmatprep.subr.mxu0 0.0
          %1069 = vmatpush2.msra.mxu0 0.0
          %1070 = vmatprep.subr.mxu0 0.0
          %1071 = vmatpush2.msra.mxu0 0.0
          %1072 = vmatprep.subr.mxu0 0.0
          %1073 = vmatpush2.msra.mxu0 0.0
          %1074 = vmatprep.subr.mxu0 0.0
          %1075 = vmatpush2.msra.mxu0 0.0
          %1076 = vmatprep.subr.mxu0 0.0
          %1077 = vmatpush2.msra.mxu0 0.0
          %1078 = vmatprep.subr.mxu0 0.0
          %1079 = vmatpush2.msra.mxu0 0.0
          %1080 = vmatprep.subr.mxu0 0.0
          %1081 = vmatpush2.msra.mxu0 0.0
          %1082 = vmatprep.subr.mxu0 0.0
          %1083 = vmatpush2.msra.mxu0 0.0
          %1084 = vmatprep.subr.mxu0 0.0
          %1085 = vmatpush2.msra.mxu0 0.0
          %1086 = vmatprep.subr.mxu0 0.0
          %1087 = vmatpush2.msra.mxu0 0.0
          %1088 = vmatprep.subr.mxu0 0.0
          %1089 = vmatpush2.msra.mxu0 0.0
          %1090 = vmatprep.mubr.f32.mxu0 0.0
          %1091 = vmatmul.mubr.f32.gmra.mxu0 %v1024
          %v1092 = vpop.f32.mrf.mxu0
          %v1093 = vadd.f32 1e-06, %v1092
          %v1094 = vpop.f32.mrf.mxu0
          %1095 = vdwg.mxu0
          %v1096 = vrcp.pop %v1093
          %v1097 = vmul.f32 1.0, %v1096
          %v1099 = vsel %vm928, %v1006, 0
          %1101 = vmatprep.subr.mxu0 0.0
          %1102 = vmatpush1.msra.mxu0 0.0
          %1103 = vmatprep.subr.mxu0 0.0
          %1104 = vmatpush1.msra.mxu0 0.0
          %1105 = vmatprep.subr.mxu0 0.0
          %1106 = vmatpush1.msra.mxu0 0.0
          %1107 = vmatprep.subr.mxu0 0.0
          %1108 = vmatpush1.msra.mxu0 0.0
          %1109 = vmatprep.subr.mxu0 0.0
          %1110 = vmatpush1.msra.mxu0 0.0
          %1111 = vmatprep.subr.mxu0 0.0
          %1112 = vmatpush1.msra.mxu0 0.0
          %1113 = vmatprep.subr.mxu0 0.0
          %1114 = vmatpush1.msra.mxu0 0.0
          %1115 = vmatprep.subr.mxu0 0.0
          %1116 = vmatpush1.msra.mxu0 0.0
          %1117 = vmatprep.subr.mxu0 0.0
          %1118 = vmatpush1.msra.mxu0 0.0
          %1119 = vmatprep.subr.mxu0 0.0
          %1120 = vmatpush1.msra.mxu0 0.0
          %1121 = vmatprep.subr.mxu0 0.0
          %1122 = vmatpush1.msra.mxu0 0.0
          %1123 = vmatprep.subr.mxu0 0.0
          %1124 = vmatpush1.msra.mxu0 0.0
          %1125 = vmatprep.subr.mxu0 0.0
          %1126 = vmatpush1.msra.mxu0 %v1014
          %1127 = vmatprep.subr.mxu0 0.0
          %1128 = vmatpush1.msra.mxu0 %v1013
          %1129 = vmatprep.subr.mxu0 0.0
          %1130 = vmatpush1.msra.mxu0 %v1012
          %1131 = vmatprep.subr.mxu0 0.0
          %1132 = vmatpush1.msra.mxu0 %v1011
          %1133 = vmatprep.subr.mxu0 0.0
          %1134 = vmatpush2.msra.mxu0 0.0
          %1135 = vmatprep.subr.mxu0 0.0
          %1136 = vmatpush2.msra.mxu0 0.0
          %1137 = vmatprep.subr.mxu0 0.0
          %1138 = vmatpush2.msra.mxu0 0.0
          %1139 = vmatprep.subr.mxu0 0.0
          %1140 = vmatpush2.msra.mxu0 0.0
          %1141 = vmatprep.subr.mxu0 0.0
          %1142 = vmatpush2.msra.mxu0 0.0
          %1143 = vmatprep.subr.mxu0 0.0
          %1144 = vmatpush2.msra.mxu0 0.0
          %1145 = vmatprep.subr.mxu0 0.0
          %1146 = vmatpush2.msra.mxu0 0.0
          %1147 = vmatprep.subr.mxu0 0.0
          %1148 = vmatpush2.msra.mxu0 0.0
          %1149 = vmatprep.subr.mxu0 0.0
          %1150 = vmatpush2.msra.mxu0 0.0
          %1151 = vmatprep.subr.mxu0 0.0
          %1152 = vmatpush2.msra.mxu0 0.0
          %1153 = vmatprep.subr.mxu0 0.0
          %1154 = vmatpush2.msra.mxu0 0.0
          %1155 = vmatprep.subr.mxu0 0.0
          %1156 = vmatpush2.msra.mxu0 0.0
          %1157 = vmatprep.subr.mxu0 0.0
          %1158 = vmatpush2.msra.mxu0 0.0
          %1159 = vmatprep.subr.mxu0 0.0
          %1160 = vmatpush2.msra.mxu0 0.0
          %1161 = vmatprep.subr.mxu0 0.0
          %1162 = vmatpush2.msra.mxu0 0.0
          %1163 = vmatprep.subr.mxu0 0.0
          %1164 = vmatpush2.msra.mxu0 0.0
          %1165 = vmatprep.mubr.f32.mxu0 0.0
          %1166 = vmatmul.mubr.f32.gmra.mxu0 %v1099
          %v1167 = vpop.f32.mrf.mxu0
          %v1168 = vadd.f32 0.0, %v1167
          %v1169 = vpop.f32.mrf.mxu0
          %1170 = vdwg.mxu0
          %v1171 = vmul.f32 %v1168, %v1097
          %v1172 = vld [vmem:[#allocation12] sm:$0xff]
          %v1173 = vld [vmem:[#allocation12 + $0x8] sm:$0xff]
          %v1174 = vld [vmem:[#allocation12 + $0x10] sm:$0xff]
          %v1175 = vld [vmem:[#allocation12 + $0x18] sm:$0xff]
          %v1177 = vsel %vm928, %v1171, 0
          %1179 = vmatprep.subr.mxu0 0.0
          %1180 = vmatpush1.msra.mxu0 0.0
          %1181 = vmatprep.subr.mxu0 0.0
          %1182 = vmatpush1.msra.mxu0 0.0
          %1183 = vmatprep.subr.mxu0 0.0
          %1184 = vmatpush1.msra.mxu0 0.0
          %1185 = vmatprep.subr.mxu0 0.0
          %1186 = vmatpush1.msra.mxu0 0.0
          %1187 = vmatprep.subr.mxu0 0.0
          %1188 = vmatpush1.msra.mxu0 0.0
          %1189 = vmatprep.subr.mxu0 0.0
          %1190 = vmatpush1.msra.mxu0 0.0
          %1191 = vmatprep.subr.mxu0 0.0
          %1192 = vmatpush1.msra.mxu0 0.0
          %1193 = vmatprep.subr.mxu0 0.0
          %1194 = vmatpush1.msra.mxu0 0.0
          %1195 = vmatprep.subr.mxu0 0.0
          %1196 = vmatpush1.msra.mxu0 0.0
          %1197 = vmatprep.subr.mxu0 0.0
          %1198 = vmatpush1.msra.mxu0 0.0
          %1199 = vmatprep.subr.mxu0 0.0
          %1200 = vmatpush1.msra.mxu0 0.0
          %1201 = vmatprep.subr.mxu0 0.0
          %1202 = vmatpush1.msra.mxu0 0.0
          %1203 = vmatprep.subr.mxu0 0.0
          %1204 = vmatpush1.msra.mxu0 %v1175
          %1205 = vmatprep.subr.mxu0 0.0
          %1206 = vmatpush1.msra.mxu0 %v1174
          %1207 = vmatprep.subr.mxu0 0.0
          %1208 = vmatpush1.msra.mxu0 %v1173
          %1209 = vmatprep.subr.mxu0 0.0
          %1210 = vmatpush1.msra.mxu0 %v1172
          %1211 = vmatprep.subr.mxu0 0.0
          %1212 = vmatpush2.msra.mxu0 0.0
          %1213 = vmatprep.subr.mxu0 0.0
          %1214 = vmatpush2.msra.mxu0 0.0
          %1215 = vmatprep.subr.mxu0 0.0
          %1216 = vmatpush2.msra.mxu0 0.0
          %1217 = vmatprep.subr.mxu0 0.0
          %1218 = vmatpush2.msra.mxu0 0.0
          %1219 = vmatprep.subr.mxu0 0.0
          %1220 = vmatpush2.msra.mxu0 0.0
          %1221 = vmatprep.subr.mxu0 0.0
          %1222 = vmatpush2.msra.mxu0 0.0
          %1223 = vmatprep.subr.mxu0 0.0
          %1224 = vmatpush2.msra.mxu0 0.0
          %1225 = vmatprep.subr.mxu0 0.0
          %1226 = vmatpush2.msra.mxu0 0.0
          %1227 = vmatprep.subr.mxu0 0.0
          %1228 = vmatpush2.msra.mxu0 0.0
          %1229 = vmatprep.subr.mxu0 0.0
          %1230 = vmatpush2.msra.mxu0 0.0
          %1231 = vmatprep.subr.mxu0 0.0
          %1232 = vmatpush2.msra.mxu0 0.0
          %1233 = vmatprep.subr.mxu0 0.0
          %1234 = vmatpush2.msra.mxu0 0.0
          %1235 = vmatprep.subr.mxu0 0.0
          %1236 = vmatpush2.msra.mxu0 0.0
          %1237 = vmatprep.subr.mxu0 0.0
          %1238 = vmatpush2.msra.mxu0 0.0
          %1239 = vmatprep.subr.mxu0 0.0
          %1240 = vmatpush2.msra.mxu0 0.0
          %1241 = vmatprep.subr.mxu0 0.0
          %1242 = vmatpush2.msra.mxu0 0.0
          %1243 = vmatprep.mubr.f32.mxu0 0.0
          %1244 = vmatmul.mubr.f32.gmra.mxu0 %v1177
          %v1245 = vpop.f32.mrf.mxu0
          %v1246 = vadd.f32 0.0, %v1245
          %v1247 = vpop.f32.mrf.mxu0
          %1248 = vdwg.mxu0
          %v1249 = vld [vmem:[%s10] sm:$0x1]
          %v1250 = vld [vmem:[%s11] sm:$0x1]
          %v1251 = vsel %vm928, %v1246, 0.0
          %1252 = vadd.xlane.f32.xlu0 %v1251
          %v1253 = vpop.xlane.xlu0 %1252
          %v1254 = vrcp.pop 32.0
          %v1255 = vmul.f32 %v1253, %v1254
          %v1256 = vsub.f32 %v1246, %v1255
          %v1257 = vmul.f32 %v1256, %v1256
          %v1258 = vsel %vm928, %v1257, 0.0
          %1259 = vadd.xlane.f32.xlu0 %v1258
          %v1260 = vpop.xlane.xlu0 %1259
          %v1261 = vmul.f32 %v1260, %v1254
          %v1262 = vadd.f32 %v1261, 1e-05
          %v1263 = vrsqrt.pop %v1262
          %v1264 = vmul.f32 %v1256, %v1263
          %v1266 = vlaneseq
          %v1267 = vshrl.u32 %v1266, 7
          %v1268 = vsub.s32 0, %v1267
          %v1269 = vrot.slane %v1249, %v1268
          %v1271 = vmul.f32 %v1264, %v1269
          %v1273 = vlaneseq
          %v1274 = vshrl.u32 %v1273, 7
          %v1275 = vsub.s32 0, %v1274
          %v1276 = vrot.slane %v1250, %v1275
          %v1278 = vadd.f32 %v1271, %v1276
          %v1279 = vld [vmem:[#allocation14] sm:$0xff]
          %v1280 = vld [vmem:[#allocation14 + $0x8] sm:$0xff]
          %v1281 = vld [vmem:[#allocation14 + $0x10] sm:$0xff]
          %v1282 = vld [vmem:[#allocation14 + $0x18] sm:$0xff]
          %v1283 = vld [vmem:[#allocation15] sm:$0xff]
          %v1284 = vld [vmem:[#allocation15 + $0x8] sm:$0xff]
          %v1285 = vld [vmem:[#allocation15 + $0x10] sm:$0xff]
          %v1286 = vld [vmem:[#allocation15 + $0x18] sm:$0xff]
          %v1288 = vsel %vm928, %v1278, 0
          %1290 = vmatprep.subr.mxu0 0.0
          %1291 = vmatpush1.msra.mxu0 0.0
          %1292 = vmatprep.subr.mxu0 0.0
          %1293 = vmatpush1.msra.mxu0 0.0
          %1294 = vmatprep.subr.mxu0 0.0
          %1295 = vmatpush1.msra.mxu0 0.0
          %1296 = vmatprep.subr.mxu0 0.0
          %1297 = vmatpush1.msra.mxu0 0.0
          %1298 = vmatprep.subr.mxu0 0.0
          %1299 = vmatpush1.msra.mxu0 0.0
          %1300 = vmatprep.subr.mxu0 0.0
          %1301 = vmatpush1.msra.mxu0 0.0
          %1302 = vmatprep.subr.mxu0 0.0
          %1303 = vmatpush1.msra.mxu0 0.0
          %1304 = vmatprep.subr.mxu0 0.0
          %1305 = vmatpush1.msra.mxu0 0.0
          %1306 = vmatprep.subr.mxu0 0.0
          %1307 = vmatpush1.msra.mxu0 0.0
          %1308 = vmatprep.subr.mxu0 0.0
          %1309 = vmatpush1.msra.mxu0 0.0
          %1310 = vmatprep.subr.mxu0 0.0
          %1311 = vmatpush1.msra.mxu0 0.0
          %1312 = vmatprep.subr.mxu0 0.0
          %1313 = vmatpush1.msra.mxu0 0.0
          %1314 = vmatprep.subr.mxu0 0.0
          %1315 = vmatpush1.msra.mxu0 %v1286
          %1316 = vmatprep.subr.mxu0 0.0
          %1317 = vmatpush1.msra.mxu0 %v1285
          %1318 = vmatprep.subr.mxu0 0.0
          %1319 = vmatpush1.msra.mxu0 %v1284
          %1320 = vmatprep.subr.mxu0 0.0
          %1321 = vmatpush1.msra.mxu0 %v1283
          %1322 = vmatprep.subr.mxu0 0.0
          %1323 = vmatpush2.msra.mxu0 0.0
          %1324 = vmatprep.subr.mxu0 0.0
          %1325 = vmatpush2.msra.mxu0 0.0
          %1326 = vmatprep.subr.mxu0 0.0
          %1327 = vmatpush2.msra.mxu0 0.0
          %1328 = vmatprep.subr.mxu0 0.0
          %1329 = vmatpush2.msra.mxu0 0.0
          %1330 = vmatprep.subr.mxu0 0.0
          %1331 = vmatpush2.msra.mxu0 0.0
          %1332 = vmatprep.subr.mxu0 0.0
          %1333 = vmatpush2.msra.mxu0 0.0
          %1334 = vmatprep.subr.mxu0 0.0
          %1335 = vmatpush2.msra.mxu0 0.0
          %1336 = vmatprep.subr.mxu0 0.0
          %1337 = vmatpush2.msra.mxu0 0.0
          %1338 = vmatprep.subr.mxu0 0.0
          %1339 = vmatpush2.msra.mxu0 0.0
          %1340 = vmatprep.subr.mxu0 0.0
          %1341 = vmatpush2.msra.mxu0 0.0
          %1342 = vmatprep.subr.mxu0 0.0
          %1343 = vmatpush2.msra.mxu0 0.0
          %1344 = vmatprep.subr.mxu0 0.0
          %1345 = vmatpush2.msra.mxu0 0.0
          %1346 = vmatprep.subr.mxu0 0.0
          %1347 = vmatpush2.msra.mxu0 0.0
          %1348 = vmatprep.subr.mxu0 0.0
          %1349 = vmatpush2.msra.mxu0 0.0
          %1350 = vmatprep.subr.mxu0 0.0
          %1351 = vmatpush2.msra.mxu0 0.0
          %1352 = vmatprep.subr.mxu0 0.0
          %1353 = vmatpush2.msra.mxu0 0.0
          %1354 = vmatprep.mubr.f32.mxu0 0.0
          %1355 = vmatmul.mubr.f32.gmra.mxu0 %v1288
          %v1356 = vpop.f32.mrf.mxu0
          %v1357 = vadd.f32 0.0, %v1356
          %v1358 = vpop.f32.mrf.mxu0
          %1359 = vdwg.mxu0
          %1360 = vmatprep.subr.mxu0 0.0
          %1361 = vmatpush1.msra.mxu0 0.0
          %1362 = vmatprep.subr.mxu0 0.0
          %1363 = vmatpush1.msra.mxu0 0.0
          %1364 = vmatprep.subr.mxu0 0.0
          %1365 = vmatpush1.msra.mxu0 0.0
          %1366 = vmatprep.subr.mxu0 0.0
          %1367 = vmatpush1.msra.mxu0 0.0
          %1368 = vmatprep.subr.mxu0 0.0
          %1369 = vmatpush1.msra.mxu0 0.0
          %1370 = vmatprep.subr.mxu0 0.0
          %1371 = vmatpush1.msra.mxu0 0.0
          %1372 = vmatprep.subr.mxu0 0.0
          %1373 = vmatpush1.msra.mxu0 0.0
          %1374 = vmatprep.subr.mxu0 0.0
          %1375 = vmatpush1.msra.mxu0 0.0
          %1376 = vmatprep.subr.mxu0 0.0
          %1377 = vmatpush1.msra.mxu0 0.0
          %1378 = vmatprep.subr.mxu0 0.0
          %1379 = vmatpush1.msra.mxu0 0.0
          %1380 = vmatprep.subr.mxu0 0.0
          %1381 = vmatpush1.msra.mxu0 0.0
          %1382 = vmatprep.subr.mxu0 0.0
          %1383 = vmatpush1.msra.mxu0 0.0
          %1384 = vmatprep.subr.mxu0 0.0
          %1385 = vmatpush1.msra.mxu0 %v1282
          %1386 = vmatprep.subr.mxu0 0.0
          %1387 = vmatpush1.msra.mxu0 %v1281
          %1388 = vmatprep.subr.mxu0 0.0
          %1389 = vmatpush1.msra.mxu0 %v1280
          %1390 = vmatprep.subr.mxu0 0.0
          %1391 = vmatpush1.msra.mxu0 %v1279
          %1392 = vmatprep.subr.mxu0 0.0
          %1393 = vmatpush2.msra.mxu0 0.0
          %1394 = vmatprep.subr.mxu0 0.0
          %1395 = vmatpush2.msra.mxu0 0.0
          %1396 = vmatprep.subr.mxu0 0.0
          %1397 = vmatpush2.msra.mxu0 0.0
          %1398 = vmatprep.subr.mxu0 0.0
          %1399 = vmatpush2.msra.mxu0 0.0
          %1400 = vmatprep.subr.mxu0 0.0
          %1401 = vmatpush2.msra.mxu0 0.0
          %1402 = vmatprep.subr.mxu0 0.0
          %1403 = vmatpush2.msra.mxu0 0.0
          %1404 = vmatprep.subr.mxu0 0.0
          %1405 = vmatpush2.msra.mxu0 0.0
          %1406 = vmatprep.subr.mxu0 0.0
          %1407 = vmatpush2.msra.mxu0 0.0
          %1408 = vmatprep.subr.mxu0 0.0
          %1409 = vmatpush2.msra.mxu0 0.0
          %1410 = vmatprep.subr.mxu0 0.0
          %1411 = vmatpush2.msra.mxu0 0.0
          %1412 = vmatprep.subr.mxu0 0.0
          %1413 = vmatpush2.msra.mxu0 0.0
          %1414 = vmatprep.subr.mxu0 0.0
          %1415 = vmatpush2.msra.mxu0 0.0
          %1416 = vmatprep.subr.mxu0 0.0
          %1417 = vmatpush2.msra.mxu0 0.0
          %1418 = vmatprep.subr.mxu0 0.0
          %1419 = vmatpush2.msra.mxu0 0.0
          %1420 = vmatprep.subr.mxu0 0.0
          %1421 = vmatpush2.msra.mxu0 0.0
          %1422 = vmatprep.subr.mxu0 0.0
          %1423 = vmatpush2.msra.mxu0 0.0
          %1424 = vmatprep.mubr.f32.mxu0 0.0
          %1425 = vmatmul.mubr.f32.gmra.mxu0 %v930
          %v1426 = vpop.f32.mrf.mxu0
          %v1427 = vadd.f32 %v1357, %v1426
          %v1428 = vpop.f32.mrf.mxu0
          %1429 = vdwg.mxu0
          %v1430 = vmax.f32 %v1427, 0.0
          %v1431 = vld [vmem:[%s9] sm:$0xff]
          %v1432 = vld [vmem:[%s9 + $0x8] sm:$0xff]
          %v1433 = vld [vmem:[%s9 + $0x10] sm:$0xff]
          %v1434 = vld [vmem:[%s9 + $0x18] sm:$0xff]
          %v1435 = vld [vmem:[%s9 + $0x20] sm:$0xff]
          %v1436 = vld [vmem:[%s9 + $0x28] sm:$0xff]
          %v1437 = vld [vmem:[%s9 + $0x30] sm:$0xff]
          %v1438 = vld [vmem:[%s9 + $0x38] sm:$0xff]
          %vm1439 = vcmask 523264
          %v1441 = vsel %vm1439, %v1430, 0
          %1443 = vmatprep.subr.mxu0 0.0
          %1444 = vmatpush1.msra.mxu0 0.0
          %1445 = vmatprep.subr.mxu0 0.0
          %1446 = vmatpush1.msra.mxu0 0.0
          %1447 = vmatprep.subr.mxu0 0.0
          %1448 = vmatpush1.msra.mxu0 0.0
          %1449 = vmatprep.subr.mxu0 0.0
          %1450 = vmatpush1.msra.mxu0 0.0
          %1451 = vmatprep.subr.mxu0 0.0
          %1452 = vmatpush1.msra.mxu0 0.0
          %1453 = vmatprep.subr.mxu0 0.0
          %1454 = vmatpush1.msra.mxu0 0.0
          %1455 = vmatprep.subr.mxu0 0.0
          %1456 = vmatpush1.msra.mxu0 0.0
          %1457 = vmatprep.subr.mxu0 0.0
          %1458 = vmatpush1.msra.mxu0 0.0
          %1459 = vmatprep.subr.mxu0 0.0
          %1460 = vmatpush1.msra.mxu0 %v1438
          %1461 = vmatprep.subr.mxu0 0.0
          %1462 = vmatpush1.msra.mxu0 %v1437
          %1463 = vmatprep.subr.mxu0 0.0
          %1464 = vmatpush1.msra.mxu0 %v1436
          %1465 = vmatprep.subr.mxu0 0.0
          %1466 = vmatpush1.msra.mxu0 %v1435
          %1467 = vmatprep.subr.mxu0 0.0
          %1468 = vmatpush1.msra.mxu0 %v1434
          %1469 = vmatprep.subr.mxu0 0.0
          %1470 = vmatpush1.msra.mxu0 %v1433
          %1471 = vmatprep.subr.mxu0 0.0
          %1472 = vmatpush1.msra.mxu0 %v1432
          %1473 = vmatprep.subr.mxu0 0.0
          %1474 = vmatpush1.msra.mxu0 %v1431
          %1475 = vmatprep.subr.mxu0 0.0
          %1476 = vmatpush2.msra.mxu0 0.0
          %1477 = vmatprep.subr.mxu0 0.0
          %1478 = vmatpush2.msra.mxu0 0.0
          %1479 = vmatprep.subr.mxu0 0.0
          %1480 = vmatpush2.msra.mxu0 0.0
          %1481 = vmatprep.subr.mxu0 0.0
          %1482 = vmatpush2.msra.mxu0 0.0
          %1483 = vmatprep.subr.mxu0 0.0
          %1484 = vmatpush2.msra.mxu0 0.0
          %1485 = vmatprep.subr.mxu0 0.0
          %1486 = vmatpush2.msra.mxu0 0.0
          %1487 = vmatprep.subr.mxu0 0.0
          %1488 = vmatpush2.msra.mxu0 0.0
          %1489 = vmatprep.subr.mxu0 0.0
          %1490 = vmatpush2.msra.mxu0 0.0
          %1491 = vmatprep.subr.mxu0 0.0
          %1492 = vmatpush2.msra.mxu0 0.0
          %1493 = vmatprep.subr.mxu0 0.0
          %1494 = vmatpush2.msra.mxu0 0.0
          %1495 = vmatprep.subr.mxu0 0.0
          %1496 = vmatpush2.msra.mxu0 0.0
          %1497 = vmatprep.subr.mxu0 0.0
          %1498 = vmatpush2.msra.mxu0 0.0
          %1499 = vmatprep.subr.mxu0 0.0
          %1500 = vmatpush2.msra.mxu0 0.0
          %1501 = vmatprep.subr.mxu0 0.0
          %1502 = vmatpush2.msra.mxu0 0.0
          %1503 = vmatprep.subr.mxu0 0.0
          %1504 = vmatpush2.msra.mxu0 0.0
          %1505 = vmatprep.subr.mxu0 0.0
          %1506 = vmatpush2.msra.mxu0 0.0
          %1507 = vmatprep.mubr.f32.mxu0 0.0
          %1508 = vmatmul.mubr.f32.gmra.mxu0 %v1441
          %v1509 = vpop.f32.mrf.mxu0
          %v1510 = vadd.f32 0.0, %v1509
          %v1511 = vpop.f32.mrf.mxu0
          %1512 = vdwg.mxu0
          %v1513 = vld [vmem:[%s12] sm:$0x1]
          %v1514 = vld [vmem:[%s13] sm:$0x1]
          %v1515 = vsel %vm928, %v1510, 0.0
          %1516 = vadd.xlane.f32.xlu0 %v1515
          %v1517 = vpop.xlane.xlu0 %1516
          %v1518 = vmul.f32 %v1517, %v1254
          %v1519 = vsub.f32 %v1510, %v1518
          %v1520 = vmul.f32 %v1519, %v1519
          %v1521 = vsel %vm928, %v1520, 0.0
          %1522 = vadd.xlane.f32.xlu0 %v1521
          %v1523 = vpop.xlane.xlu0 %1522
          %v1524 = vmul.f32 %v1523, %v1254
          %v1525 = vadd.f32 %v1524, 1e-05
          %v1526 = vrsqrt.pop %v1525
          %v1527 = vmul.f32 %v1519, %v1526
          %v1529 = vlaneseq
          %v1530 = vshrl.u32 %v1529, 7
          %v1531 = vsub.s32 0, %v1530
          %v1532 = vrot.slane %v1513, %v1531
          %v1534 = vmul.f32 %v1527, %v1532
          %v1536 = vlaneseq
          %v1537 = vshrl.u32 %v1536, 7
          %v1538 = vsub.s32 0, %v1537
          %v1539 = vrot.slane %v1514, %v1538
          %v1541 = vadd.f32 %v1534, %v1539
          %vm1542 = vcmp.gt.f32.partialorder %v1541, 0.0
          %v1543 = vadd.f32 %v1541, 1.0
          %v1544 = vmul.f32 %v1541, 1.442695
          %v1545 = vpow.pop %v1544
          %v1546 = vsel %vm1542, %v1543, %v1545
          %1547 = vxpose.xlu0.b32.start [1/16] %v1546, 128
          %1548 = vxpose.xlu0.b32.cont [2/16] 0.0, 128
          %1549 = vxpose.xlu0.b32.cont [3/16] 0.0, 128
          %1550 = vxpose.xlu0.b32.cont [4/16] 0.0, 128
          %1551 = vxpose.xlu0.b32.cont [5/16] 0.0, 128
          %1552 = vxpose.xlu0.b32.cont [6/16] 0.0, 128
          %1553 = vxpose.xlu0.b32.cont [7/16] 0.0, 128
          %1554 = vxpose.xlu0.b32.cont [8/16] 0.0, 128
          %1555 = vxpose.xlu0.b32.cont [9/16] 0.0, 128
          %1556 = vxpose.xlu0.b32.cont [10/16] 0.0, 128
          %1557 = vxpose.xlu0.b32.cont [11/16] 0.0, 128
          %1558 = vxpose.xlu0.b32.cont [12/16] 0.0, 128
          %1559 = vxpose.xlu0.b32.cont [13/16] 0.0, 128
          %1560 = vxpose.xlu0.b32.cont [14/16] 0.0, 128
          %1561 = vxpose.xlu0.b32.cont [15/16] 0.0, 128
          %1562 = vxpose.xlu0.b32.end [16/16] 0.0, 128
          %v1563 = vpop.trf.xlu0
          %v1564 = vpop.trf.xlu0
          %v1565 = vpop.trf.xlu0
          %v1566 = vpop.trf.xlu0
          %v1567 = vpop.trf.xlu0
          %v1568 = vpop.trf.xlu0
          %v1569 = vpop.trf.xlu0
          %v1570 = vpop.trf.xlu0
          %v1571 = vpop.trf.xlu0
          %v1572 = vpop.trf.xlu0
          %v1573 = vpop.trf.xlu0
          %v1574 = vpop.trf.xlu0
          %v1575 = vpop.trf.xlu0
          %v1576 = vpop.trf.xlu0
          %v1577 = vpop.trf.xlu0
          %v1578 = vpop.trf.xlu0
          %vm1579 = vcmask 64512
          %v1581 = vsel %vm1579, %v1563, 0
          %v1584 = vsel %vm1579, %v1564, 0
          %v1587 = vsel %vm1579, %v1565, 0
          %v1590 = vsel %vm1579, %v1566, 0
          %1592 = vmatprep.subr.mxu0 0.0
          %1593 = vmatpush1.msra.mxu0 0.0
          %1594 = vmatprep.subr.mxu0 0.0
          %1595 = vmatpush1.msra.mxu0 0.0
          %1596 = vmatprep.subr.mxu0 0.0
          %1597 = vmatpush1.msra.mxu0 0.0
          %1598 = vmatprep.subr.mxu0 0.0
          %1599 = vmatpush1.msra.mxu0 0.0
          %1600 = vmatprep.subr.mxu0 0.0
          %1601 = vmatpush1.msra.mxu0 0.0
          %1602 = vmatprep.subr.mxu0 0.0
          %1603 = vmatpush1.msra.mxu0 0.0
          %1604 = vmatprep.subr.mxu0 0.0
          %1605 = vmatpush1.msra.mxu0 0.0
          %1606 = vmatprep.subr.mxu0 0.0
          %1607 = vmatpush1.msra.mxu0 0.0
          %1608 = vmatprep.subr.mxu0 0.0
          %1609 = vmatpush1.msra.mxu0 0.0
          %1610 = vmatprep.subr.mxu0 0.0
          %1611 = vmatpush1.msra.mxu0 0.0
          %1612 = vmatprep.subr.mxu0 0.0
          %1613 = vmatpush1.msra.mxu0 0.0
          %1614 = vmatprep.subr.mxu0 0.0
          %1615 = vmatpush1.msra.mxu0 0.0
          %1616 = vmatprep.subr.mxu0 0.0
          %1617 = vmatpush1.msra.mxu0 0.0
          %1618 = vmatprep.subr.mxu0 0.0
          %1619 = vmatpush1.msra.mxu0 0.0
          %1620 = vmatprep.subr.mxu0 0.0
          %1621 = vmatpush1.msra.mxu0 0.0
          %1622 = vmatprep.subr.mxu0 0.0
          %1623 = vmatpush1.msra.mxu0 %v1541
          %1624 = vmatprep.subr.mxu0 0.0
          %1625 = vmatpush2.msra.mxu0 0.0
          %1626 = vmatprep.subr.mxu0 0.0
          %1627 = vmatpush2.msra.mxu0 0.0
          %1628 = vmatprep.subr.mxu0 0.0
          %1629 = vmatpush2.msra.mxu0 0.0
          %1630 = vmatprep.subr.mxu0 0.0
          %1631 = vmatpush2.msra.mxu0 0.0
          %1632 = vmatprep.subr.mxu0 0.0
          %1633 = vmatpush2.msra.mxu0 0.0
          %1634 = vmatprep.subr.mxu0 0.0
          %1635 = vmatpush2.msra.mxu0 0.0
          %1636 = vmatprep.subr.mxu0 0.0
          %1637 = vmatpush2.msra.mxu0 0.0
          %1638 = vmatprep.subr.mxu0 0.0
          %1639 = vmatpush2.msra.mxu0 0.0
          %1640 = vmatprep.subr.mxu0 0.0
          %1641 = vmatpush2.msra.mxu0 0.0
          %1642 = vmatprep.subr.mxu0 0.0
          %1643 = vmatpush2.msra.mxu0 0.0
          %1644 = vmatprep.subr.mxu0 0.0
          %1645 = vmatpush2.msra.mxu0 0.0
          %1646 = vmatprep.subr.mxu0 0.0
          %1647 = vmatpush2.msra.mxu0 0.0
          %1648 = vmatprep.subr.mxu0 0.0
          %1649 = vmatpush2.msra.mxu0 0.0
          %1650 = vmatprep.subr.mxu0 0.0
          %1651 = vmatpush2.msra.mxu0 0.0
          %1652 = vmatprep.subr.mxu0 0.0
          %1653 = vmatpush2.msra.mxu0 0.0
          %1654 = vmatprep.subr.mxu0 0.0
          %1655 = vmatpush2.msra.mxu0 0.0
          %1656 = vmatprep.mubr.f32.mxu0 0.0
          %1657 = vmatmul.mubr.f32.gmra.mxu0 %v1581
          %v1658 = vpop.f32.mrf.mxu0
          %v1659 = vadd.f32 0.0, %v1658
          %v1660 = vpop.f32.mrf.mxu0
          %1661 = vmatprep.mubr.f32.mxu0 0.0
          %1662 = vmatmul.mubr.f32.gmra.mxu0 %v1584
          %v1663 = vpop.f32.mrf.mxu0
          %v1664 = vadd.f32 0.0, %v1663
          %v1665 = vpop.f32.mrf.mxu0
          %1666 = vmatprep.mubr.f32.mxu0 0.0
          %1667 = vmatmul.mubr.f32.gmra.mxu0 %v1587
          %v1668 = vpop.f32.mrf.mxu0
          %v1669 = vadd.f32 0.0, %v1668
          %v1670 = vpop.f32.mrf.mxu0
          %1671 = vmatprep.mubr.f32.mxu0 0.0
          %1672 = vmatmul.mubr.f32.gmra.mxu0 %v1590
          %v1673 = vpop.f32.mrf.mxu0
          %v1674 = vadd.f32 0.0, %v1673
          %v1675 = vpop.f32.mrf.mxu0
          %1676 = vdwg.mxu0
          %1677 = vst.msk [vmem:[#allocation4] sm:$0xff] %vm928, %v1659
          %1678 = vst.msk [vmem:[#allocation4 + $0x8] sm:$0xff] %vm928, %v1664
          %1679 = vst.msk [vmem:[#allocation4 + $0x10] sm:$0xff] %vm928, %v1669
          %1680 = vst.msk [vmem:[#allocation4 + $0x18] sm:$0xff] %vm928, %v1674
          %v1681 = vsel %vm928, %v1546, 0.0
          %v1682 = vrot.slane %v1681, 4
          %v1683 = vadd.f32 %v1681, %v1682
          %v1684 = vrot.slane %v1683, 2
          %v1685 = vadd.f32 %v1683, %v1684
          %v1686 = vrot.slane %v1685, 1
          %v1687 = vadd.f32 %v1685, %v1686
          %vm1688 = vcmask 253952
          %1689 = vst.msk [vmem:[#allocation5] sm:$0x1] %vm1688, %v1687
        $region112: #{tpu_custom_call.1} parent=75 // pred_fallthru
          _
        // Predicated region
        $region113: #{tpu_custom_call.1} parent=75 // pred_check
          %p1690 = pneg %p914
        $region114: #{tpu_custom_call.1} parent=75 // pred_check_branch
          %1692 = sbr.rel (%p1690) target = $region116
        $region115: #{tpu_custom_call.1} parent=75 // pred_region
          %vm1693 = vcmp.gt.f32.partialorder %v587, 0.0
          %v1694 = vadd.f32 %v587, 1.0
          %v1695 = vmul.f32 %v587, 1.442695
          %v1696 = vpow.pop %v1695
          %v1697 = vsel %vm1693, %v1694, %v1696
          %v1698 = vld [vmem:[#allocation5] sm:$0x1]
          %v1700 = vlaneseq
          %v1701 = vshrl.u32 %v1700, 7
          %v1702 = vsub.s32 0, %v1701
          %v1703 = vrot.slane %v1698, %v1702
          %v1705 = vmul.f32 %v1697, %v1703
          %vm1706 = vcmask 261120
          %v1707 = vsel %vm1706, %v1705, 0.0
          %1708 = vadd.xlane.f32.xlu0 %v1707
          %v1709 = vpop.xlane.xlu0 %1708
          %v1710 = vadd.f32 %v1709, 1e-06
          %v1711 = vrcp.pop %v1710
          %v1712 = vmul.f32 1.0, %v1711
          %v1713 = vld [vmem:[#allocation4] sm:$0xff]
          %v1714 = vld [vmem:[#allocation4 + $0x8] sm:$0xff]
          %v1715 = vld [vmem:[#allocation4 + $0x10] sm:$0xff]
          %v1716 = vld [vmem:[#allocation4 + $0x18] sm:$0xff]
          %v1718 = vsel %vm1706, %v1697, 0
          %1720 = vmatprep.subr.mxu0 0.0
          %1721 = vmatpush1.msra.mxu0 0.0
          %1722 = vmatprep.subr.mxu0 0.0
          %1723 = vmatpush1.msra.mxu0 0.0
          %1724 = vmatprep.subr.mxu0 0.0
          %1725 = vmatpush1.msra.mxu0 0.0
          %1726 = vmatprep.subr.mxu0 0.0
          %1727 = vmatpush1.msra.mxu0 0.0
          %1728 = vmatprep.subr.mxu0 0.0
          %1729 = vmatpush1.msra.mxu0 0.0
          %1730 = vmatprep.subr.mxu0 0.0
          %1731 = vmatpush1.msra.mxu0 0.0
          %1732 = vmatprep.subr.mxu0 0.0
          %1733 = vmatpush1.msra.mxu0 0.0
          %1734 = vmatprep.subr.mxu0 0.0
          %1735 = vmatpush1.msra.mxu0 0.0
          %1736 = vmatprep.subr.mxu0 0.0
          %1737 = vmatpush1.msra.mxu0 0.0
          %1738 = vmatprep.subr.mxu0 0.0
          %1739 = vmatpush1.msra.mxu0 0.0
          %1740 = vmatprep.subr.mxu0 0.0
          %1741 = vmatpush1.msra.mxu0 0.0
          %1742 = vmatprep.subr.mxu0 0.0
          %1743 = vmatpush1.msra.mxu0 0.0
          %1744 = vmatprep.subr.mxu0 0.0
          %1745 = vmatpush1.msra.mxu0 %v1716
          %1746 = vmatprep.subr.mxu0 0.0
          %1747 = vmatpush1.msra.mxu0 %v1715
          %1748 = vmatprep.subr.mxu0 0.0
          %1749 = vmatpush1.msra.mxu0 %v1714
          %1750 = vmatprep.subr.mxu0 0.0
          %1751 = vmatpush1.msra.mxu0 %v1713
          %1752 = vmatprep.subr.mxu0 0.0
          %1753 = vmatpush2.msra.mxu0 0.0
          %1754 = vmatprep.subr.mxu0 0.0
          %1755 = vmatpush2.msra.mxu0 0.0
          %1756 = vmatprep.subr.mxu0 0.0
          %1757 = vmatpush2.msra.mxu0 0.0
          %1758 = vmatprep.subr.mxu0 0.0
          %1759 = vmatpush2.msra.mxu0 0.0
          %1760 = vmatprep.subr.mxu0 0.0
          %1761 = vmatpush2.msra.mxu0 0.0
          %1762 = vmatprep.subr.mxu0 0.0
          %1763 = vmatpush2.msra.mxu0 0.0
          %1764 = vmatprep.subr.mxu0 0.0
          %1765 = vmatpush2.msra.mxu0 0.0
          %1766 = vmatprep.subr.mxu0 0.0
          %1767 = vmatpush2.msra.mxu0 0.0
          %1768 = vmatprep.subr.mxu0 0.0
          %1769 = vmatpush2.msra.mxu0 0.0
          %1770 = vmatprep.subr.mxu0 0.0
          %1771 = vmatpush2.msra.mxu0 0.0
          %1772 = vmatprep.subr.mxu0 0.0
          %1773 = vmatpush2.msra.mxu0 0.0
          %1774 = vmatprep.subr.mxu0 0.0
          %1775 = vmatpush2.msra.mxu0 0.0
          %1776 = vmatprep.subr.mxu0 0.0
          %1777 = vmatpush2.msra.mxu0 0.0
          %1778 = vmatprep.subr.mxu0 0.0
          %1779 = vmatpush2.msra.mxu0 0.0
          %1780 = vmatprep.subr.mxu0 0.0
          %1781 = vmatpush2.msra.mxu0 0.0
          %1782 = vmatprep.subr.mxu0 0.0
          %1783 = vmatpush2.msra.mxu0 0.0
          %1784 = vmatprep.mubr.f32.mxu0 0.0
          %1785 = vmatmul.mubr.f32.gmra.mxu0 %v1718
          %v1786 = vpop.f32.mrf.mxu0
          %v1787 = vadd.f32 0.0, %v1786
          %v1788 = vpop.f32.mrf.mxu0
          %1789 = vdwg.mxu0
          %v1790 = vmul.f32 %v1787, %v1712
          %v1791 = vadd.f32 %v587, %v1790
          %1792 = vst.msk [vmem:[%s577] sm:$0xff] %vm1706, %v1791
        $region116: #{tpu_custom_call.1} parent=75 // pred_fallthru
          _
        %s1793 = sand.u32 %s364, 1
        %s1794 = scalar_lea.sflag [#allocation8], %s1793
        %s1795 = sand.u32 %s364, 1
        %s1796 = smul.addr %s1795, 8
        %s1797 = scalar_lea.vmem [#allocation17], %s1796
        // Predicated region
        $region117: #{tpu_custom_call.1} parent=75 // pred_check
          %p1798 = pneg %p374
        $region118: #{tpu_custom_call.1} parent=75 // pred_check_branch
          %1800 = sbr.rel (%p1798) target = $region120
        $region119: #{tpu_custom_call.1} parent=75 // pred_region
          %s1801 = smul.u32 %s39, %s38
          %s1803 = ssub.s32 128, 128
          %1804 = vsyncadd %s1794, %s1803
          %s1805 = smul.addr %s37, 2
          %s1806 = sadd.s32 %s1801, %s1805
          %s1807 = smul.addr %s1806, 128
          %s1808 = scalar_lea.hbm %s14, %s1807
          %s1810 = sshll.u32 %s1797, 4
          %s1811 = int_to_ptr.vmem [resolvable:$true] %s1810
          %1813 = dma.vmem_to_hbm [thread:$0]  %s1811, 128, %s1808, %s1794
        $region120: #{tpu_custom_call.1} parent=75 // pred_fallthru
          _
      $region76: #{tpu_custom_call.1} parent=5 // pred_fallthru
        _
      %p1814 = scmp.le.s32.totalorder 2, %s27
      // Predicated region
      $region121: #{tpu_custom_call.1} parent=5 // pred_check
        %p1815 = pneg %p1814
      $region122: #{tpu_custom_call.1} parent=5 // pred_check_branch
        %1817 = sbr.rel (%p1815) target = $region124
      $region123: #{tpu_custom_call.1} parent=5 // pred_region
        %s1818 = ssub.s32 %s27, 2
        // Predicated region
        $region125: #{tpu_custom_call.1} parent=123 // pred_check
          %p1819 = pneg %p380
        $region126: #{tpu_custom_call.1} parent=123 // pred_check_branch
          %1821 = sbr.rel (%p1819) target = $region128
        $region127: #{tpu_custom_call.1} parent=123 // pred_region
          %s1822 = sand.u32 %s365, 1
          %s1823 = scalar_lea.sflag [#allocation8], %s1822
          %s1824 = sand.u32 %s365, 1
          %s1825 = smul.addr %s1824, 8
          %s1826 = scalar_lea.vmem [#allocation17], %s1825
          %1827 = dma.done %s1823, 128
        $region128: #{tpu_custom_call.1} parent=123 // pred_fallthru
          _
      $region124: #{tpu_custom_call.1} parent=5 // pred_fallthru
        _
    $region6: #{tpu_custom_call.1} parent=1 // loop_footer
      %s31 = sadd.s32 1, %s27
    $region7: #{tpu_custom_call.1} parent=1 // loop_footer_branch
      %26 = sbr.rel target = $region3
    $region8: #{tpu_custom_call.1} parent=1 // loop_exit
      _
    %1828 = vsyncpa [#allocation7], 1
    %s1829 = scalar_lea.sflag [#allocation7], 1
    %1830 = vsyncpa %s1829, 1
    %1831 = vsyncpa [#allocation10], 1
    %1832 = vsyncpa [#allocation13], 1
    %1833 = vsyncpa [#allocation16], 1
    %1834 = vsyncpa [#allocation8], 1
    %s1835 = scalar_lea.sflag [#allocation8], 1
    %1836 = vsyncpa %s1835, 1

</llo_original>
